<compile_context>
chip_gen: v7x
topology: tpu7x:2x2x1
jax: 0.10.0
libtpu: 0.0.40
codegen_flags: <defaults>
</compile_context>

<pallas_src>
import functools

import jax
import jax.numpy as jnp
import numpy as np
from jax import lax
from jax.experimental import pallas as pl
from jax.experimental.pallas import tpu as pltpu

# bf16 MXU operands (f32 accumulation): ~2-3x matmul throughput, ~0.5% max
# interpolation error.  Set to jnp.float32 for bit-exact weights.
_MM_DTYPE = jnp.bfloat16


def _round_up(x, m):
    return (x + m - 1) // m * m


def _disparity_warp_kernel(x_ref, xup_ref, xdn_ref, disp_ref,
                           warped_ref, mask_ref, *,
                           h_img, w_img, wo_chunk, mm_dtype):
    # x_ref:      (1, TH, C, W)  rows [t*TH, (t+1)*TH) of this batch element
    # xup_ref:    (1, 1, C, W)   row t*TH - 1   (zeros above the image)
    # xdn_ref:    (1, 1, C, W)   row (t+1)*TH   (zeros below the image)
    # disp_ref:   (1, TH, W)     disparity rows of this tile
    # warped_ref: (1, TH, C, W)  output rows
    # mask_ref:   (1, TH, W)     int8 validity mask (cast to bool outside)
    _, TH, C, W = x_ref.shape
    t = pl.program_id(1)
    row0 = t * TH
    f32 = jnp.float32

    x_t = x_ref[0]                                              # (TH, C, W)
    disp = disp_ref[0]                                          # (TH, W)

    # ---- row (y) interpolation -------------------------------------------
    # align_corners=False row resampling only ever mixes rows h-1 / h / h+1,
    # so it is a 3-tap per-row blend with one halo row per tile side.
    h_loc = row0 + lax.broadcasted_iota(jnp.int32, (TH, 1), 0)  # global rows
    gy = 2.0 * h_loc.astype(f32) / (h_img - 1) - 1.0
    iy = ((gy + 1.0) * h_img - 1.0) * 0.5                       # in [h-.5, h+.5]
    iy0f = jnp.floor(iy)
    wy1 = iy - iy0f
    wy0 = 1.0 - wy1
    up_tap = iy0f.astype(jnp.int32) == (h_loc - 1)              # taps (h-1,h) vs (h,h+1)
    p = jnp.where(up_tap & (h_loc >= 1), wy0, 0.0)              # weight on row h-1
    q = jnp.where(up_tap, wy1, wy0)                             # weight on row h
    r = jnp.where(jnp.logical_not(up_tap) & (h_loc <= h_img - 2), wy1, 0.0)

    x_up = jnp.concatenate([xup_ref[0], x_t[:TH - 1]], axis=0)  # row h-1
    x_dn = jnp.concatenate([x_t[1:], xdn_ref[0]], axis=0)       # row h+1
    xy = (q[:, :, None] * x_t
          + p[:, :, None] * x_up
          + r[:, :, None] * x_dn)                               # (TH, C, W) f32
    xy_mm = xy.astype(mm_dtype)

    # ---- column sampling positions (disparity dependent) ------------------
    w_out = lax.broadcasted_iota(jnp.int32, (TH, W), 1).astype(f32)
    gx = 2.0 * (w_out - disp) / (w_img - 1) - 1.0               # (TH, W)
    # reference mask = (|gx|<=1) & (|gy|<=1); the gy term is always true.
    mask_ref[0] = jnp.where(jnp.abs(gx) <= 1.0, 1, 0).astype(jnp.int8)
    ix = ((gx + 1.0) * w_img - 1.0) * 0.5                       # real x coordinate

    # ---- column (x) interpolation: bilinear "hat" matrix on the MXU --------
    # Gx[h, o, i] = max(0, 1 - |i - ix[h, o]|): equals the 2-tap bilinear
    # weights at i = floor(ix), floor(ix)+1 and is zero elsewhere; taps that
    # fall outside [0, W-1] simply don't exist in the matrix, which is exactly
    # padding_mode='zeros'.  Chunk over the output-column axis so the
    # (TH, WO, W) slab stays inside the VMEM budget.
    w_in = lax.broadcasted_iota(jnp.int32, (1, 1, W), 2).astype(f32)
    n_chunks = (W + wo_chunk - 1) // wo_chunk
    for ci in range(n_chunks):
        w0 = ci * wo_chunk
        wc = min(wo_chunk, W - w0)
        ixc = ix[:, w0:w0 + wc]                                 # (TH, wc)
        gmat = jnp.maximum(1.0 - jnp.abs(w_in - ixc[:, :, None]), 0.0)
        gmat = gmat.astype(mm_dtype)                            # (TH, wc, W)
        # batched matmul: (TH, C, Wi) x (TH, wc, Wi) -> (TH, C, wc)
        out_c = lax.dot_general(
            xy_mm, gmat,
            dimension_numbers=(((2,), (2,)), ((0,), (0,))),
            preferred_element_type=f32)
        if n_chunks == 1:
            warped_ref[0] = out_c.astype(warped_ref.dtype)
        else:
            warped_ref[0, :, :, w0:w0 + wc] = out_c.astype(warped_ref.dtype)


def _vmem_capacity_bytes():
    try:
        return int(pltpu.get_tpu_info().vmem_capacity_bytes)
    except Exception:
        return 64 << 20   # conservative: v7x per-TensorCore VMEM


def _tile_bytes(th, wo, C, W):
    """Rough per-grid-step VMEM working set (blocks double-buffered + temps)."""
    blk = (2 * th * C * W * 4        # x row tile
           + 2 * 2 * C * W * 4       # halo rows
           + 2 * th * W * 4          # disparity
           + 2 * th * C * W * 4      # warped output
           + 2 * th * W)             # int8 mask
    ytmp = th * C * W * (4 * 4 + 2)  # x_up, x_dn, xy (+slack) f32 + bf16 copy
    gtmp = th * wo * W * (2 * 4 + 2) + th * C * wo * 4   # Gx temps + partial out
    misc = th * W * 4 * 6            # gx / ix / mask temporaries
    return blk + ytmp + gtmp + misc


def _plan_tiles(N, C, H, W, vmem_bytes):
    """Pick (row tile TH, W_out chunk, padded H, #row tiles)."""
    budget = max(int(vmem_bytes) * 45 // 100, 4 << 20)
    h8 = _round_up(H, 8)
    wo_opts = sorted({wo for wo in (W, 512, 256, 128) if wo <= W},
                     reverse=True) or [W]
    best = None
    th = min(256, h8)
    while th >= 8:
        h_pad = _round_up(H, th)
        n_t = h_pad // th
        waste_ok = (h_pad - H) * 4 <= h_pad          # <= 25% padded rows
        if waste_ok:
            for wo in wo_opts:
                if _tile_bytes(th, wo, C, W) <= budget:
                    cand = (th, wo, h_pad, n_t)
                    if best is None:
                        best = cand
                    if N * n_t >= 2 or h8 <= 8:      # keep both v7x TCs busy
                        return cand
                    break
        th -= 8
    if best is not None:
        return best
    h_pad = _round_up(H, 8)
    return 8, min(wo_opts[-1], W), h_pad, h_pad // 8


@functools.partial(jax.jit, static_argnames=("occlusion_mask",))
def disparity_warping(x, disparity, occlusion_mask=0):
    """Pallas equivalent of DisparityWarping(occlusion_mask).forward(x, disparity)."""
    assert x.shape[-2:] == disparity.shape[-2:], \
        'inconsistent shape between flow and source image'
    if occlusion_mask:
        # TODO(synk): occlusion_mask=1 needs disparity_mask()'s serial
        # per-column scatter; not implemented (default module config is 0).
        raise NotImplementedError("occlusion_mask path not implemented")

    N, C, H, W = x.shape
    assert H >= 2 and W >= 2, "normalization divides by (dim - 1)"

    x = x.astype(jnp.float32)
    disparity = disparity.astype(jnp.float32)

    vmem_cap = _vmem_capacity_bytes()
    TH, WO, H_pad, n_t = _plan_tiles(N, C, H, W, vmem_cap)

    # Layout plumbing in XLA: H-major, channels as sublanes, W on lanes.
    x_t = jnp.transpose(x, (0, 2, 1, 3))                    # (N, H, C, W)
    disp2 = disparity.reshape(N, H, W)
    if H_pad != H:
        x_t = jnp.pad(x_t, ((0, 0), (0, H_pad - H), (0, 0), (0, 0)))
        disp2 = jnp.pad(disp2, ((0, 0), (0, H_pad - H), (0, 0)))

    # One-row halos per row tile: rows t*TH-1 and (t+1)*TH (zeros off edges).
    zero_row = jnp.zeros((N, 1, C, W), jnp.float32)
    x_up = jnp.concatenate([zero_row, x_t[:, TH - 1::TH][:, :n_t - 1]], axis=1)
    x_dn = jnp.concatenate([x_t[:, TH::TH][:, :n_t - 1], zero_row], axis=1)

    est = _tile_bytes(TH, WO, C, W)
    vmem_limit = int(min(vmem_cap * 85 // 100, max(64 << 20, est + (16 << 20))))

    kernel = functools.partial(
        _disparity_warp_kernel,
        h_img=H, w_img=W, wo_chunk=WO, mm_dtype=_MM_DTYPE)

    warped_pad, mask_i8 = pl.pallas_call(
        kernel,
        out_shape=(
            jax.ShapeDtypeStruct((N, H_pad, C, W), jnp.float32),
            jax.ShapeDtypeStruct((N, H_pad, W), jnp.int8),
        ),
        grid=(N, n_t),
        in_specs=[
            pl.BlockSpec((1, TH, C, W), lambda n, t: (n, t, 0, 0)),
            pl.BlockSpec((1, 1, C, W), lambda n, t: (n, t, 0, 0)),
            pl.BlockSpec((1, 1, C, W), lambda n, t: (n, t, 0, 0)),
            pl.BlockSpec((1, TH, W), lambda n, t: (n, t, 0)),
        ],
        out_specs=(
            pl.BlockSpec((1, TH, C, W), lambda n, t: (n, t, 0, 0)),
            pl.BlockSpec((1, TH, W), lambda n, t: (n, t, 0)),
        ),
        compiler_params=pltpu.CompilerParams(
            dimension_semantics=("parallel", "parallel"),
            vmem_limit_bytes=vmem_limit),
    )(x_t, x_up, x_dn, disp2)

    warped = jnp.transpose(warped_pad[:, :H], (0, 2, 1, 3))      # back to NCHW
    mask = mask_i8[:, :H].astype(jnp.bool_)[:, None]             # (N, 1, H, W)
    return warped, mask


def _reference(x, disparity):
    """Pure-JAX f32 reference: grid_sample bilinear/zeros/align_corners=False."""
    N, C, H, W = x.shape
    xs = jnp.arange(W, dtype=jnp.float32)[None, None, :]
    ys = jnp.arange(H, dtype=jnp.float32)[None, :, None]
    gx = 2.0 * (xs - disparity[:, 0]) / (W - 1) - 1.0            # (N, H, W)
    gy = jnp.broadcast_to(2.0 * ys / (H - 1) - 1.0, gx.shape)
    mask = (jnp.abs(gx) <= 1.0) & (jnp.abs(gy) <= 1.0)
    ix = ((gx + 1.0) * W - 1.0) * 0.5
    iy = ((gy + 1.0) * H - 1.0) * 0.5
    ix0 = jnp.floor(ix)
    iy0 = jnp.floor(iy)
    wx1 = ix - ix0
    wy1 = iy - iy0
    n_idx = jnp.arange(N)[:, None, None]

    def gather(iyi, ixi):
        valid = (iyi >= 0) & (iyi <= H - 1) & (ixi >= 0) & (ixi <= W - 1)
        iyc = jnp.clip(iyi, 0, H - 1).astype(jnp.int32)
        ixc = jnp.clip(ixi, 0, W - 1).astype(jnp.int32)
        v = x[n_idx, :, iyc, ixc]                                # (N, H, W, C)
        v = jnp.transpose(v, (0, 3, 1, 2))                       # (N, C, H, W)
        return v * valid[:, None].astype(x.dtype)

    w00 = ((1 - wx1) * (1 - wy1))[:, None]
    w01 = (wx1 * (1 - wy1))[:, None]
    w10 = ((1 - wx1) * wy1)[:, None]
    w11 = (wx1 * wy1)[:, None]
    out = (w00 * gather(iy0, ix0) + w01 * gather(iy0, ix0 + 1)
           + w10 * gather(iy0 + 1, ix0) + w11 * gather(iy0 + 1, ix0 + 1))
    return out, mask


if __name__ == "__main__":
    key = jax.random.PRNGKey(0)
    k1, k2 = jax.random.split(key)
    N, C, H, W = 2, 4, 16, 16
    x = jax.random.normal(k1, (N, C, H, W), dtype=jnp.float32)
    disparity = jax.random.uniform(k2, (N, 1, H, W), dtype=jnp.float32,
                                   minval=0.0, maxval=5.0)

    warped, mask = disparity_warping(x, disparity)
    jax.block_until_ready((warped, mask))

    assert warped.shape == (N, C, H, W) and warped.dtype == jnp.float32
    assert mask.shape == (N, 1, H, W) and mask.dtype == jnp.bool_
    assert bool(jnp.all(jnp.isfinite(warped)))

    # Sanity-check against a pure-JAX f32 reference (tolerance covers the
    # bf16 MXU operands; flip _MM_DTYPE to f32 for bit-exact interpolation).
    ref_w, ref_m = _reference(x, disparity)
    np.testing.assert_allclose(np.asarray(warped), np.asarray(ref_w),
                               rtol=5e-2, atol=5e-2)
    assert bool(jnp.all(mask[:, 0] == ref_m))

    print("KERNEL_OK")
</pallas_src>

<mosaic_0001>
module attributes {stable_mosaic.version = 11 : i64} {
  func.func @_disparity_warp_kernel(%arg0: i32, %arg1: i32, %arg2: memref<1x16x4x16xf32, #tpu.memory_space<vmem>>, %arg3: memref<1x1x4x16xf32, #tpu.memory_space<vmem>>, %arg4: memref<1x1x4x16xf32, #tpu.memory_space<vmem>>, %arg5: memref<1x16x16xf32, #tpu.memory_space<vmem>>, %arg6: memref<1x16x4x16xf32, #tpu.memory_space<vmem>>, %arg7: memref<1x16x16xi8, #tpu.memory_space<vmem>>) attributes {dimension_semantics = [#tpu.dimension_semantics<parallel>, #tpu.dimension_semantics<parallel>], iteration_bounds = array<i64: 2, 1>, scalar_prefetch = 0 : i64, scratch_operands = 0 : i64, tpu.core_type = #tpu.core_type<tc>, window_params = [{transform_indices = @transform_0, window_bounds = array<i64: 1, 16, 4, 16>}, {transform_indices = @transform_1, window_bounds = array<i64: 1, 1, 4, 16>}, {transform_indices = @transform_2, window_bounds = array<i64: 1, 1, 4, 16>}, {transform_indices = @transform_3, window_bounds = array<i64: 1, 16, 16>}, {transform_indices = @transform_4, window_bounds = array<i64: 1, 16, 4, 16>}, {transform_indices = @transform_5, window_bounds = array<i64: 1, 16, 16>}]} {
    %c16_i32 = arith.constant 16 : i32
    %0 = arith.muli %arg1, %c16_i32 : i32
    %c0 = arith.constant 0 : index
    %c0_0 = arith.constant 0 : index
    %c0_1 = arith.constant 0 : index
    %c0_2 = arith.constant 0 : index
    %1 = vector.load %arg2[%c0, %c0_0, %c0_1, %c0_2] : memref<1x16x4x16xf32, #tpu.memory_space<vmem>>, vector<1x16x4x16xf32>
    %2 = vector.shape_cast %1 : vector<1x16x4x16xf32> to vector<16x4x16xf32>
    %c0_3 = arith.constant 0 : index
    %c0_4 = arith.constant 0 : index
    %c0_5 = arith.constant 0 : index
    %3 = vector.load %arg5[%c0_3, %c0_4, %c0_5] : memref<1x16x16xf32, #tpu.memory_space<vmem>>, vector<1x16x16xf32>
    %4 = vector.shape_cast %3 : vector<1x16x16xf32> to vector<16x16xf32>
    %5 = tpu.iota {dimensions = array<i32: 0>} : vector<16x1xi32>
    %6 = vector.broadcast %0 : i32 to vector<16x1xi32>
    %7 = arith.addi %6, %5 : vector<16x1xi32>
    %8 = arith.sitofp %7 : vector<16x1xi32> to vector<16x1xf32>
    %cst = arith.constant 2.000000e+00 : f32
    %9 = vector.broadcast %cst : f32 to vector<16x1xf32>
    %10 = arith.mulf %9, %8 : vector<16x1xf32>
    %cst_6 = arith.constant 1.500000e+01 : f32
    %11 = vector.broadcast %cst_6 : f32 to vector<16x1xf32>
    %12 = arith.divf %10, %11 : vector<16x1xf32>
    %cst_7 = arith.constant 1.000000e+00 : f32
    %13 = vector.broadcast %cst_7 : f32 to vector<16x1xf32>
    %14 = arith.subf %12, %13 : vector<16x1xf32>
    %cst_8 = arith.constant 1.000000e+00 : f32
    %15 = vector.broadcast %cst_8 : f32 to vector<16x1xf32>
    %16 = arith.addf %14, %15 : vector<16x1xf32>
    %cst_9 = arith.constant 1.600000e+01 : f32
    %17 = vector.broadcast %cst_9 : f32 to vector<16x1xf32>
    %18 = arith.mulf %16, %17 : vector<16x1xf32>
    %cst_10 = arith.constant 1.000000e+00 : f32
    %19 = vector.broadcast %cst_10 : f32 to vector<16x1xf32>
    %20 = arith.subf %18, %19 : vector<16x1xf32>
    %cst_11 = arith.constant 5.000000e-01 : f32
    %21 = vector.broadcast %cst_11 : f32 to vector<16x1xf32>
    %22 = arith.mulf %20, %21 : vector<16x1xf32>
    %23 = math.floor %22 : vector<16x1xf32>
    %24 = arith.subf %22, %23 : vector<16x1xf32>
    %cst_12 = arith.constant 1.000000e+00 : f32
    %25 = vector.broadcast %cst_12 : f32 to vector<16x1xf32>
    %26 = arith.subf %25, %24 : vector<16x1xf32>
    %27 = arith.fptosi %23 : vector<16x1xf32> to vector<16x1xi32>
    %c1_i32 = arith.constant 1 : i32
    %28 = vector.broadcast %c1_i32 : i32 to vector<16x1xi32>
    %29 = arith.subi %7, %28 : vector<16x1xi32>
    %30 = arith.cmpi eq, %27, %29 : vector<16x1xi32>
    %c1_i32_13 = arith.constant 1 : i32
    %31 = vector.broadcast %c1_i32_13 : i32 to vector<16x1xi32>
    %32 = arith.cmpi sge, %7, %31 : vector<16x1xi32>
    %33 = arith.andi %30, %32 : vector<16x1xi1>
    %cst_14 = arith.constant 0.000000e+00 : f32
    %34 = vector.broadcast %cst_14 : f32 to vector<16x1xf32>
    %35 = arith.select %33, %26, %34 : vector<16x1xi1>, vector<16x1xf32>
    %36 = arith.select %30, %24, %26 : vector<16x1xi1>, vector<16x1xf32>
    %cst_15 = arith.constant dense<true> : vector<16x1xi1>
    %37 = arith.xori %30, %cst_15 : vector<16x1xi1>
    %c14_i32 = arith.constant 14 : i32
    %38 = vector.broadcast %c14_i32 : i32 to vector<16x1xi32>
    %39 = arith.cmpi sle, %7, %38 : vector<16x1xi32>
    %40 = arith.andi %37, %39 : vector<16x1xi1>
    %cst_16 = arith.constant 0.000000e+00 : f32
    %41 = vector.broadcast %cst_16 : f32 to vector<16x1xf32>
    %42 = arith.select %40, %24, %41 : vector<16x1xi1>, vector<16x1xf32>
    %c0_17 = arith.constant 0 : index
    %c0_18 = arith.constant 0 : index
    %c0_19 = arith.constant 0 : index
    %c0_20 = arith.constant 0 : index
    %43 = vector.load %arg3[%c0_17, %c0_18, %c0_19, %c0_20] : memref<1x1x4x16xf32, #tpu.memory_space<vmem>>, vector<1x1x4x16xf32>
    %44 = vector.shape_cast %43 : vector<1x1x4x16xf32> to vector<1x4x16xf32>
    %45 = vector.extract_strided_slice %2 {offsets = [0, 0, 0], sizes = [15, 4, 16], strides = [1, 1, 1]} : vector<16x4x16xf32> to vector<15x4x16xf32>
    %46 = tpu.concatenate %44, %45 in 0 : vector<1x4x16xf32>, vector<15x4x16xf32> -> vector<16x4x16xf32>
    %47 = vector.extract_strided_slice %2 {offsets = [1, 0, 0], sizes = [15, 4, 16], strides = [1, 1, 1]} : vector<16x4x16xf32> to vector<15x4x16xf32>
    %c0_21 = arith.constant 0 : index
    %c0_22 = arith.constant 0 : index
    %c0_23 = arith.constant 0 : index
    %c0_24 = arith.constant 0 : index
    %48 = vector.load %arg4[%c0_21, %c0_22, %c0_23, %c0_24] : memref<1x1x4x16xf32, #tpu.memory_space<vmem>>, vector<1x1x4x16xf32>
    %49 = vector.shape_cast %48 : vector<1x1x4x16xf32> to vector<1x4x16xf32>
    %50 = tpu.concatenate %47, %49 in 0 : vector<15x4x16xf32>, vector<1x4x16xf32> -> vector<16x4x16xf32>
    %51 = vector.shape_cast %36 : vector<16x1xf32> to vector<16x1x1xf32>
    %52 = vector.broadcast %51 : vector<16x1x1xf32> to vector<16x4x16xf32>
    %53 = arith.mulf %52, %2 : vector<16x4x16xf32>
    %54 = vector.shape_cast %35 : vector<16x1xf32> to vector<16x1x1xf32>
    %55 = vector.broadcast %54 : vector<16x1x1xf32> to vector<16x4x16xf32>
    %56 = arith.mulf %55, %46 : vector<16x4x16xf32>
    %57 = arith.addf %53, %56 : vector<16x4x16xf32>
    %58 = vector.shape_cast %42 : vector<16x1xf32> to vector<16x1x1xf32>
    %59 = vector.broadcast %58 : vector<16x1x1xf32> to vector<16x4x16xf32>
    %60 = arith.mulf %59, %50 : vector<16x4x16xf32>
    %61 = arith.addf %57, %60 : vector<16x4x16xf32>
    %62 = arith.truncf %61 : vector<16x4x16xf32> to vector<16x4x16xbf16>
    %63 = tpu.iota {dimensions = array<i32: 1>} : vector<16x16xi32>
    %64 = arith.sitofp %63 : vector<16x16xi32> to vector<16x16xf32>
    %65 = arith.subf %64, %4 : vector<16x16xf32>
    %cst_25 = arith.constant 2.000000e+00 : f32
    %66 = vector.broadcast %cst_25 : f32 to vector<16x16xf32>
    %67 = arith.mulf %66, %65 : vector<16x16xf32>
    %cst_26 = arith.constant 1.500000e+01 : f32
    %68 = vector.broadcast %cst_26 : f32 to vector<16x16xf32>
    %69 = arith.divf %67, %68 : vector<16x16xf32>
    %cst_27 = arith.constant 1.000000e+00 : f32
    %70 = vector.broadcast %cst_27 : f32 to vector<16x16xf32>
    %71 = arith.subf %69, %70 : vector<16x16xf32>
    %72 = math.absf %71 : vector<16x16xf32>
    %cst_28 = arith.constant 1.000000e+00 : f32
    %73 = vector.broadcast %cst_28 : f32 to vector<16x16xf32>
    %74 = arith.cmpf ole, %72, %73 : vector<16x16xf32>
    %c1_i32_29 = arith.constant 1 : i32
    %c0_i32 = arith.constant 0 : i32
    %75 = vector.broadcast %c1_i32_29 : i32 to vector<16x16xi32>
    %76 = vector.broadcast %c0_i32 : i32 to vector<16x16xi32>
    %77 = arith.select %74, %75, %76 : vector<16x16xi1>, vector<16x16xi32>
    %78 = arith.trunci %77 : vector<16x16xi32> to vector<16x16xi8>
    %c0_30 = arith.constant 0 : index
    %c0_31 = arith.constant 0 : index
    %c0_32 = arith.constant 0 : index
    %79 = vector.load %arg7[%c0_30, %c0_31, %c0_32] : memref<1x16x16xi8, #tpu.memory_space<vmem>>, vector<1x16x16xi8>
    %80 = vector.shape_cast %79 : vector<1x16x16xi8> to vector<16x16xi8>
    %81 = vector.shape_cast %78 : vector<16x16xi8> to vector<1x16x16xi8>
    tpu.vector_store %arg7[%c0_30, %c0_31, %c0_32], %81 {strides = array<i32>} : memref<1x16x16xi8, #tpu.memory_space<vmem>>, vector<1x16x16xi8>,
    %cst_33 = arith.constant 1.000000e+00 : f32
    %82 = vector.broadcast %cst_33 : f32 to vector<16x16xf32>
    %83 = arith.addf %71, %82 : vector<16x16xf32>
    %cst_34 = arith.constant 1.600000e+01 : f32
    %84 = vector.broadcast %cst_34 : f32 to vector<16x16xf32>
    %85 = arith.mulf %83, %84 : vector<16x16xf32>
    %cst_35 = arith.constant 1.000000e+00 : f32
    %86 = vector.broadcast %cst_35 : f32 to vector<16x16xf32>
    %87 = arith.subf %85, %86 : vector<16x16xf32>
    %cst_36 = arith.constant 5.000000e-01 : f32
    %88 = vector.broadcast %cst_36 : f32 to vector<16x16xf32>
    %89 = arith.mulf %87, %88 : vector<16x16xf32>
    %90 = tpu.iota {dimensions = array<i32: 2>} : vector<1x1x16xi32>
    %91 = arith.sitofp %90 : vector<1x1x16xi32> to vector<1x1x16xf32>
    %92 = vector.shape_cast %89 : vector<16x16xf32> to vector<16x16x1xf32>
    %93 = vector.broadcast %91 : vector<1x1x16xf32> to vector<16x16x16xf32>
    %94 = vector.broadcast %92 : vector<16x16x1xf32> to vector<16x16x16xf32>
    %95 = arith.subf %93, %94 : vector<16x16x16xf32>
    %96 = math.absf %95 : vector<16x16x16xf32>
    %cst_37 = arith.constant 1.000000e+00 : f32
    %97 = vector.broadcast %cst_37 : f32 to vector<16x16x16xf32>
    %98 = arith.subf %97, %96 : vector<16x16x16xf32>
    %cst_38 = arith.constant 0.000000e+00 : f32
    %99 = vector.broadcast %cst_38 : f32 to vector<16x16x16xf32>
    %100 = arith.maximumf %98, %99 : vector<16x16x16xf32>
    %101 = arith.truncf %100 : vector<16x16x16xf32> to vector<16x16x16xbf16>
    %cst_39 = arith.constant dense<0.000000e+00> : vector<16x4x16xf32>
    %102 = tpu.matmul %62, %101, %cst_39 {dimension_numbers = #tpu.dot_dimension_numbers<[2], [2], [1], [1], [0, 0, 0, 1, 1, 1], [0], [0]>} : vector<16x4x16xbf16>, vector<16x16x16xbf16>, vector<16x4x16xf32> -> vector<16x4x16xf32>
    %c0_40 = arith.constant 0 : index
    %c0_41 = arith.constant 0 : index
    %c0_42 = arith.constant 0 : index
    %c0_43 = arith.constant 0 : index
    %103 = vector.load %arg6[%c0_40, %c0_41, %c0_42, %c0_43] : memref<1x16x4x16xf32, #tpu.memory_space<vmem>>, vector<1x16x4x16xf32>
    %104 = vector.shape_cast %103 : vector<1x16x4x16xf32> to vector<16x4x16xf32>
    %105 = vector.shape_cast %102 : vector<16x4x16xf32> to vector<1x16x4x16xf32>
    tpu.vector_store %arg6[%c0_40, %c0_41, %c0_42, %c0_43], %105 {strides = array<i32>} : memref<1x16x4x16xf32, #tpu.memory_space<vmem>>, vector<1x16x4x16xf32>,
    return
  }
  func.func @transform_0(%arg0: i32, %arg1: i32) -> (i32, i32, i32, i32) {
    %c0_i32 = arith.constant 0 : i32
    %c0_i32_0 = arith.constant 0 : i32
    %c0_i32_1 = arith.constant 0 : i32
    return %arg0, %arg1, %c0_i32, %c0_i32_0 : i32, i32, i32, i32
  }
  func.func @transform_1(%arg0: i32, %arg1: i32) -> (i32, i32, i32, i32) {
    %c0_i32 = arith.constant 0 : i32
    %c0_i32_0 = arith.constant 0 : i32
    %c0_i32_1 = arith.constant 0 : i32
    return %arg0, %arg1, %c0_i32, %c0_i32_0 : i32, i32, i32, i32
  }
  func.func @transform_2(%arg0: i32, %arg1: i32) -> (i32, i32, i32, i32) {
    %c0_i32 = arith.constant 0 : i32
    %c0_i32_0 = arith.constant 0 : i32
    %c0_i32_1 = arith.constant 0 : i32
    return %arg0, %arg1, %c0_i32, %c0_i32_0 : i32, i32, i32, i32
  }
  func.func @transform_3(%arg0: i32, %arg1: i32) -> (i32, i32, i32) {
    %c0_i32 = arith.constant 0 : i32
    %c0_i32_0 = arith.constant 0 : i32
    return %arg0, %arg1, %c0_i32 : i32, i32, i32
  }
  func.func @transform_4(%arg0: i32, %arg1: i32) -> (i32, i32, i32, i32) {
    %c0_i32 = arith.constant 0 : i32
    %c0_i32_0 = arith.constant 0 : i32
    %c0_i32_1 = arith.constant 0 : i32
    return %arg0, %arg1, %c0_i32, %c0_i32_0 : i32, i32, i32, i32
  }
  func.func @transform_5(%arg0: i32, %arg1: i32) -> (i32, i32, i32) {
    %c0_i32 = arith.constant 0 : i32
    %c0_i32_0 = arith.constant 0 : i32
    return %arg0, %arg1, %c0_i32 : i32, i32, i32
  }
}

</mosaic_0001>

<llo_original>
// kernel: disparity_warping.1
$region0: #{disparity_warping.1}
  #allocation0 [shape = 'u32[]', space=smem, size = 0x4, offset = 0x4, fixed_abs, tag = 'smem constant byte address 0x4 - core index']
  #allocation1 [shape = 'u32[144,128]{1,0:T(1,128)}', space=vmem, size = 0x12000, scoped, tag = 'internal scratch']
  %s0 = inlined_call_operand.vmem [shape: f32[2,16,4,16], index: 0, kind: input, shape index: {}]
  %s1 = inlined_call_operand.vmem [shape: f32[2,1,4,16], index: 1, kind: input, shape index: {}, may-alias: {1,2}]
  %s2 = inlined_call_operand.vmem [shape: f32[2,1,4,16], index: 2, kind: input, shape index: {}, may-alias: {1,2}]
  %s3 = inlined_call_operand.vmem [shape: f32[2,16,16], index: 3, kind: input, shape index: {}]
  %s4 = inlined_call_operand.vmem [shape: f32[2,16,4,16], index: 4, kind: output, shape index: {0}]
  %s5 = inlined_call_operand.vmem [shape: s8[2,16,16], index: 5, kind: output, shape index: {1}]
  %6 = xla_tuple %s4, %s5
  %s7 = sld [smem:[#allocation0]]
  $region57: #{disparity_warping.1} parent=0
    _
  %s9 = ssub.s32 1, %s7
  %s10 = scalar_select 0, %s9, %s7
  loop: start=0, step=1, limit=4
  $region2: #{disparity_warping.1} parent=0 // loop_pre_header
    _
  $region3: #{disparity_warping.1} parent=0 // loop_header
    %s12 = sphi 0, %s16
    %p13 = scmp.ge.s32.totalorder %s12, 4
    %s19 = sphi 0, %s31
    %s20 = sphi 0, %s27
    %s21 = sphi 0, %s19
    %s22 = sphi 0, %s20
    %s23 = sphi 0, %s21
    %s24 = sphi 0, %s22
    %s36 = sphi 0, %s38
    %s39 = sphi 0, %s36
    %s40 = sphi 0, %s39
    %s56 = sphi 0, %s40
    %s64 = sphi 0, %s66
    %s67 = sphi 0, %s64
    %s68 = sphi 0, %s67
    %s84 = sphi 0, %s68
    %s92 = sphi 0, %s94
    %s95 = sphi 0, %s92
    %s96 = sphi 0, %s95
    %s112 = sphi 0, %s96
    %s120 = sphi 0, %s122
    %s123 = sphi 0, %s120
    %s124 = sphi 0, %s123
    %s140 = sphi 0, %s124
    %s148 = sphi 0, %s150
    %s151 = sphi 0, %s148
    %s152 = sphi 0, %s151
    %s168 = sphi 0, %s152
    %s176 = sphi 0, %s178
    %s179 = sphi 0, %s176
    %s180 = sphi 0, %s179
    %s196 = sphi 0, %s180
  $region4: #{disparity_warping.1} parent=0 // loop_header_branch
    %15 = sbr.rel (%p13) target = $region8
  $region5: #{disparity_warping.1} parent=0 // loop_body
    %s17 = ssub.s32 %s12, 1
    %s18 = ssub.s32 %s12, 2
    %s25 = sadd.s32 1, %s20
    %p26 = scmp.ge.s32.totalorder %s25, 1
    %s27 = scalar_select %p26, 0, %s25
    %s28 = sadd.s32 1, %s19
    %s29 = scalar_select %p26, %s28, %s19
    %p30 = scmp.ge.s32.totalorder %s29, 2
    %s31 = scalar_select %p30, 0, %s29
    %s32 = ssub.s32 %s19, %s31
    %s33 = ssub.s32 %s20, %s27
    %s34 = sor.u32 %s32, %s33
    %p35 = scmp.eq.s32.totalorder %s34, 0
    %s37 = sadd.s32 %s36, 1
    %s38 = scalar_select %p35, %s36, %s37
    %p41 = pneg %p35
    %p42 = scmp.eq.s32.totalorder %s12, 1
    %p43 = por %p41, %p42
    %p44 = scmp.ne.s32.totalorder %s36, %s39
    %p45 = scmp.eq.s32.totalorder %s12, 0
    %p46 = por %p44, %p45
    %p47 = scmp.ne.s32.totalorder %s36, %s39
    %p48 = scmp.eq.s32.totalorder %s17, 1
    %p49 = por %p47, %p48
    %p50 = scmp.ne.s32.totalorder %s39, %s40
    %p51 = scmp.eq.s32.totalorder %s17, 0
    %p52 = por %p50, %p51
    %p53 = scmp.ne.s32.totalorder %s39, %s40
    %p54 = scmp.eq.s32.totalorder %s18, 1
    %p55 = por %p53, %p54
    %p57 = scmp.ne.s32.totalorder %s40, %s56
    %p58 = scmp.eq.s32.totalorder %s18, 0
    %p59 = por %p57, %p58
    %s60 = ssub.s32 %s19, %s31
    %s61 = ssub.s32 %s20, %s27
    %s62 = sor.u32 %s60, %s61
    %p63 = scmp.eq.s32.totalorder %s62, 0
    %s65 = sadd.s32 %s64, 1
    %s66 = scalar_select %p63, %s64, %s65
    %p69 = pneg %p63
    %p70 = scmp.eq.s32.totalorder %s12, 1
    %p71 = por %p69, %p70
    %p72 = scmp.ne.s32.totalorder %s64, %s67
    %p73 = scmp.eq.s32.totalorder %s12, 0
    %p74 = por %p72, %p73
    %p75 = scmp.ne.s32.totalorder %s64, %s67
    %p76 = scmp.eq.s32.totalorder %s17, 1
    %p77 = por %p75, %p76
    %p78 = scmp.ne.s32.totalorder %s67, %s68
    %p79 = scmp.eq.s32.totalorder %s17, 0
    %p80 = por %p78, %p79
    %p81 = scmp.ne.s32.totalorder %s67, %s68
    %p82 = scmp.eq.s32.totalorder %s18, 1
    %p83 = por %p81, %p82
    %p85 = scmp.ne.s32.totalorder %s68, %s84
    %p86 = scmp.eq.s32.totalorder %s18, 0
    %p87 = por %p85, %p86
    %s88 = ssub.s32 %s19, %s31
    %s89 = ssub.s32 %s20, %s27
    %s90 = sor.u32 %s88, %s89
    %p91 = scmp.eq.s32.totalorder %s90, 0
    %s93 = sadd.s32 %s92, 1
    %s94 = scalar_select %p91, %s92, %s93
    %p97 = pneg %p91
    %p98 = scmp.eq.s32.totalorder %s12, 1
    %p99 = por %p97, %p98
    %p100 = scmp.ne.s32.totalorder %s92, %s95
    %p101 = scmp.eq.s32.totalorder %s12, 0
    %p102 = por %p100, %p101
    %p103 = scmp.ne.s32.totalorder %s92, %s95
    %p104 = scmp.eq.s32.totalorder %s17, 1
    %p105 = por %p103, %p104
    %p106 = scmp.ne.s32.totalorder %s95, %s96
    %p107 = scmp.eq.s32.totalorder %s17, 0
    %p108 = por %p106, %p107
    %p109 = scmp.ne.s32.totalorder %s95, %s96
    %p110 = scmp.eq.s32.totalorder %s18, 1
    %p111 = por %p109, %p110
    %p113 = scmp.ne.s32.totalorder %s96, %s112
    %p114 = scmp.eq.s32.totalorder %s18, 0
    %p115 = por %p113, %p114
    %s116 = ssub.s32 %s19, %s31
    %s117 = ssub.s32 %s20, %s27
    %s118 = sor.u32 %s116, %s117
    %p119 = scmp.eq.s32.totalorder %s118, 0
    %s121 = sadd.s32 %s120, 1
    %s122 = scalar_select %p119, %s120, %s121
    %p125 = pneg %p119
    %p126 = scmp.eq.s32.totalorder %s12, 1
    %p127 = por %p125, %p126
    %p128 = scmp.ne.s32.totalorder %s120, %s123
    %p129 = scmp.eq.s32.totalorder %s12, 0
    %p130 = por %p128, %p129
    %p131 = scmp.ne.s32.totalorder %s120, %s123
    %p132 = scmp.eq.s32.totalorder %s17, 1
    %p133 = por %p131, %p132
    %p134 = scmp.ne.s32.totalorder %s123, %s124
    %p135 = scmp.eq.s32.totalorder %s17, 0
    %p136 = por %p134, %p135
    %p137 = scmp.ne.s32.totalorder %s123, %s124
    %p138 = scmp.eq.s32.totalorder %s18, 1
    %p139 = por %p137, %p138
    %p141 = scmp.ne.s32.totalorder %s124, %s140
    %p142 = scmp.eq.s32.totalorder %s18, 0
    %p143 = por %p141, %p142
    %s144 = ssub.s32 %s19, %s31
    %s145 = ssub.s32 %s20, %s27
    %s146 = sor.u32 %s144, %s145
    %p147 = scmp.eq.s32.totalorder %s146, 0
    %s149 = sadd.s32 %s148, 1
    %s150 = scalar_select %p147, %s148, %s149
    %p153 = pneg %p147
    %p154 = scmp.eq.s32.totalorder %s12, 1
    %p155 = por %p153, %p154
    %p156 = scmp.ne.s32.totalorder %s148, %s151
    %p157 = scmp.eq.s32.totalorder %s12, 0
    %p158 = por %p156, %p157
    %p159 = scmp.ne.s32.totalorder %s148, %s151
    %p160 = scmp.eq.s32.totalorder %s17, 1
    %p161 = por %p159, %p160
    %p162 = scmp.ne.s32.totalorder %s151, %s152
    %p163 = scmp.eq.s32.totalorder %s17, 0
    %p164 = por %p162, %p163
    %p165 = scmp.ne.s32.totalorder %s151, %s152
    %p166 = scmp.eq.s32.totalorder %s18, 1
    %p167 = por %p165, %p166
    %p169 = scmp.ne.s32.totalorder %s152, %s168
    %p170 = scmp.eq.s32.totalorder %s18, 0
    %p171 = por %p169, %p170
    %s172 = ssub.s32 %s19, %s31
    %s173 = ssub.s32 %s20, %s27
    %s174 = sor.u32 %s172, %s173
    %p175 = scmp.eq.s32.totalorder %s174, 0
    %s177 = sadd.s32 %s176, 1
    %s178 = scalar_select %p175, %s176, %s177
    %p181 = pneg %p175
    %p182 = scmp.eq.s32.totalorder %s12, 1
    %p183 = por %p181, %p182
    %p184 = scmp.ne.s32.totalorder %s176, %s179
    %p185 = scmp.eq.s32.totalorder %s12, 0
    %p186 = por %p184, %p185
    %p187 = scmp.ne.s32.totalorder %s176, %s179
    %p188 = scmp.eq.s32.totalorder %s17, 1
    %p189 = por %p187, %p188
    %p190 = scmp.ne.s32.totalorder %s179, %s180
    %p191 = scmp.eq.s32.totalorder %s17, 0
    %p192 = por %p190, %p191
    %p193 = scmp.ne.s32.totalorder %s179, %s180
    %p194 = scmp.eq.s32.totalorder %s18, 1
    %p195 = por %p193, %p194
    %p197 = scmp.ne.s32.totalorder %s180, %s196
    %p198 = scmp.eq.s32.totalorder %s18, 0
    %p199 = por %p197, %p198
    %p200 = scmp.le.s32.totalorder 1, %s12
    %p201 = scmp.lt.s32.totalorder %s12, 3
    %p202 = pnand %p200, %p201
    %p203 = pneg %p202
    // Predicated region
    $region9: #{disparity_warping.1} parent=5 // pred_check
      _
    $region10: #{disparity_warping.1} parent=5 // pred_check_branch
      %205 = sbr.rel (%p202) target = $region12
    $region11: #{disparity_warping.1} parent=5 // pred_region
      %s206 = ssub.s32 %s12, 1
    $region12: #{disparity_warping.1} parent=5 // pred_fallthru
      _
    %p207 = scmp.lt.s32.totalorder %s12, 2
    // Predicated region
    $region13: #{disparity_warping.1} parent=5 // pred_check
      %p208 = pneg %p207
    $region14: #{disparity_warping.1} parent=5 // pred_check_branch
      %210 = sbr.rel (%p208) target = $region16
    $region15: #{disparity_warping.1} parent=5 // pred_region
      // Predicated region
      $region17: #{disparity_warping.1} parent=15 // pred_check
        %p211 = pneg %p46
      $region18: #{disparity_warping.1} parent=15 // pred_check_branch
        %213 = sbr.rel (%p211) target = $region20
      $region19: #{disparity_warping.1} parent=15 // pred_region
        %s214 = smul.u32 16, %s20
        %p215 = scmp.lt.s32.totalorder %s19, 1
        %s216 = scalar_select %p215, %s19, 1
        %p217 = scmp.lt.s32.totalorder %s214, 15
        %s218 = scalar_select %p217, %s214, 15
        %s219 = smul.addr %s216, 16
        %s220 = sadd.s32 %s218, %s219
        %s221 = smul.addr %s220, 4
        %s222 = scalar_lea.vmem %s0, %s221
        %s223 = smul.u32 16, %s20
      $region20: #{disparity_warping.1} parent=15 // pred_fallthru
        _
      // Predicated region
      $region21: #{disparity_warping.1} parent=15 // pred_check
        %p224 = pneg %p74
      $region22: #{disparity_warping.1} parent=15 // pred_check_branch
        %226 = sbr.rel (%p224) target = $region24
      $region23: #{disparity_warping.1} parent=15 // pred_region
        %p227 = scmp.lt.s32.totalorder %s19, 1
        %s228 = scalar_select %p227, %s19, 1
        %p229 = scmp.lt.s32.totalorder %s20, 0
        %s230 = scalar_select %p229, %s20, 0
        %s231 = sadd.s32 %s230, %s228
        %s232 = smul.addr %s231, 4
        %s233 = scalar_lea.vmem %s1, %s232
      $region24: #{disparity_warping.1} parent=15 // pred_fallthru
        _
      // Predicated region
      $region25: #{disparity_warping.1} parent=15 // pred_check
        %p234 = pneg %p102
      $region26: #{disparity_warping.1} parent=15 // pred_check_branch
        %236 = sbr.rel (%p234) target = $region28
      $region27: #{disparity_warping.1} parent=15 // pred_region
        %p237 = scmp.lt.s32.totalorder %s19, 1
        %s238 = scalar_select %p237, %s19, 1
        %p239 = scmp.lt.s32.totalorder %s20, 0
        %s240 = scalar_select %p239, %s20, 0
        %s241 = sadd.s32 %s240, %s238
        %s242 = smul.addr %s241, 4
        %s243 = scalar_lea.vmem %s2, %s242
      $region28: #{disparity_warping.1} parent=15 // pred_fallthru
        _
      // Predicated region
      $region29: #{disparity_warping.1} parent=15 // pred_check
        %p244 = pneg %p130
      $region30: #{disparity_warping.1} parent=15 // pred_check_branch
        %246 = sbr.rel (%p244) target = $region32
      $region31: #{disparity_warping.1} parent=15 // pred_region
        %s247 = smul.u32 2, %s20
        %p248 = scmp.lt.s32.totalorder %s19, 1
        %s249 = scalar_select %p248, %s19, 1
        %p250 = scmp.lt.s32.totalorder %s247, 1
        %s251 = scalar_select %p250, %s247, 1
        %s252 = smul.addr %s249, 2
        %s253 = sadd.s32 %s251, %s252
        %s254 = smul.addr %s253, 8
        %s255 = scalar_lea.vmem %s3, %s254
        %s256 = smul.u32 2, %s20
      $region32: #{disparity_warping.1} parent=15 // pred_fallthru
        _
    $region16: #{disparity_warping.1} parent=5 // pred_fallthru
      _
    %p257 = scmp.le.s32.totalorder 1, %s12
    %p258 = scmp.lt.s32.totalorder %s12, 3
    %p259 = pnand %p257, %p258
    %p260 = pneg %p259
    // Predicated region
    $region33: #{disparity_warping.1} parent=5 // pred_check
      _
    $region34: #{disparity_warping.1} parent=5 // pred_check_branch
      %262 = sbr.rel (%p259) target = $region36
    $region35: #{disparity_warping.1} parent=5 // pred_region
      %s263 = ssub.s32 %s12, 1
      %s264 = smul.u32 16, %s22
      %p265 = scmp.lt.s32.totalorder %s21, 1
      %s266 = scalar_select %p265, %s21, 1
      %p267 = scmp.lt.s32.totalorder %s264, 15
      %s268 = scalar_select %p267, %s264, 15
      %s269 = smul.addr %s266, 16
      %s270 = sadd.s32 %s268, %s269
      %s271 = smul.addr %s270, 4
      %s272 = scalar_lea.vmem %s0, %s271
      %p273 = pneg %p52
      %p274 = pneg %p49
      %p275 = scmp.lt.s32.totalorder %s21, 1
      %s276 = scalar_select %p275, %s21, 1
      %p277 = scmp.lt.s32.totalorder %s22, 0
      %s278 = scalar_select %p277, %s22, 0
      %s279 = sadd.s32 %s278, %s276
      %s280 = smul.addr %s279, 4
      %s281 = scalar_lea.vmem %s1, %s280
      %p282 = pneg %p80
      %p283 = pneg %p77
      %p284 = scmp.lt.s32.totalorder %s21, 1
      %s285 = scalar_select %p284, %s21, 1
      %p286 = scmp.lt.s32.totalorder %s22, 0
      %s287 = scalar_select %p286, %s22, 0
      %s288 = sadd.s32 %s287, %s285
      %s289 = smul.addr %s288, 4
      %s290 = scalar_lea.vmem %s2, %s289
      %p291 = pneg %p108
      %p292 = pneg %p105
      %s293 = smul.u32 2, %s22
      %p294 = scmp.lt.s32.totalorder %s21, 1
      %s295 = scalar_select %p294, %s21, 1
      %p296 = scmp.lt.s32.totalorder %s293, 1
      %s297 = scalar_select %p296, %s293, 1
      %s298 = smul.addr %s295, 2
      %s299 = sadd.s32 %s297, %s298
      %s300 = smul.addr %s299, 8
      %s301 = scalar_lea.vmem %s3, %s300
      %p302 = pneg %p136
      %p303 = pneg %p133
      %p304 = pneg %p164
      %p305 = pneg %p161
      %s306 = smul.u32 16, %s22
      %p307 = scmp.lt.s32.totalorder %s21, 1
      %s308 = scalar_select %p307, %s21, 1
      %p309 = scmp.lt.s32.totalorder %s306, 15
      %s310 = scalar_select %p309, %s306, 15
      %s311 = smul.addr %s308, 16
      %s312 = sadd.s32 %s310, %s311
      %s313 = smul.addr %s312, 4
      %s314 = scalar_lea.vmem %s4, %s313
      %p315 = pneg %p192
      %p316 = pneg %p189
      %s317 = smul.u32 2, %s22
      %p318 = scmp.lt.s32.totalorder %s21, 1
      %s319 = scalar_select %p318, %s21, 1
      %p320 = scmp.lt.s32.totalorder %s317, 1
      %s321 = scalar_select %p320, %s317, 1
      %s322 = smul.addr %s319, 2
      %s323 = sadd.s32 %s321, %s322
      %s324 = smul.addr %s323, 2
      %s325 = scalar_lea.vmem %s5, %s324
      %s326 = smul.u32 16, %s22
      %p327 = scmp.lt.s32.totalorder %s21, 1
      %s328 = scalar_select %p327, %s21, 1
      %p329 = scmp.lt.s32.totalorder %s326, 15
      %s330 = scalar_select %p329, %s326, 15
      %s331 = smul.addr %s328, 16
      %s332 = sadd.s32 %s330, %s331
      %s333 = smul.addr %s332, 4
      %s334 = scalar_lea.vmem %s0, %s333
      %s335 = smul.u32 16, %s22
      %p336 = scmp.lt.s32.totalorder %s21, 1
      %s337 = scalar_select %p336, %s21, 1
      %p338 = scmp.lt.s32.totalorder %s22, 0
      %s339 = scalar_select %p338, %s22, 0
      %s340 = sadd.s32 %s339, %s337
      %s341 = smul.addr %s340, 4
      %s342 = scalar_lea.vmem %s1, %s341
      %p343 = scmp.lt.s32.totalorder %s21, 1
      %s344 = scalar_select %p343, %s21, 1
      %p345 = scmp.lt.s32.totalorder %s22, 0
      %s346 = scalar_select %p345, %s22, 0
      %s347 = sadd.s32 %s346, %s344
      %s348 = smul.addr %s347, 4
      %s349 = scalar_lea.vmem %s2, %s348
      %s350 = smul.u32 2, %s22
      %p351 = scmp.lt.s32.totalorder %s21, 1
      %s352 = scalar_select %p351, %s21, 1
      %p353 = scmp.lt.s32.totalorder %s350, 1
      %s354 = scalar_select %p353, %s350, 1
      %s355 = smul.addr %s352, 2
      %s356 = sadd.s32 %s354, %s355
      %s357 = smul.addr %s356, 8
      %s358 = scalar_lea.vmem %s3, %s357
      %s359 = smul.u32 2, %s22
      %s360 = smul.u32 16, %s22
      %p361 = scmp.lt.s32.totalorder %s21, 1
      %s362 = scalar_select %p361, %s21, 1
      %p363 = scmp.lt.s32.totalorder %s360, 15
      %s364 = scalar_select %p363, %s360, 15
      %s365 = smul.addr %s362, 16
      %s366 = sadd.s32 %s364, %s365
      %s367 = smul.addr %s366, 4
      %s368 = scalar_lea.vmem %s4, %s367
      %s369 = smul.u32 16, %s22
      %s370 = smul.u32 2, %s22
      %p371 = scmp.lt.s32.totalorder %s21, 1
      %s372 = scalar_select %p371, %s21, 1
      %p373 = scmp.lt.s32.totalorder %s370, 1
      %s374 = scalar_select %p373, %s370, 1
      %s375 = smul.addr %s372, 2
      %s376 = sadd.s32 %s374, %s375
      %s377 = smul.addr %s376, 2
      %s378 = scalar_lea.vmem %s5, %s377
      %s379 = smul.u32 2, %s22
      %s381 = smul.u32 %s22, 16
      %v382 = vld [vmem:[%s334] sm:$0xf]
      %v383 = vld [vmem:[%s334 + $0x4] sm:$0xf]
      %v384 = vld [vmem:[%s334 + $0x8] sm:$0xf]
      %v385 = vld [vmem:[%s334 + $0xc] sm:$0xf]
      %v386 = vld [vmem:[%s334 + $0x10] sm:$0xf]
      %v387 = vld [vmem:[%s334 + $0x14] sm:$0xf]
      %v388 = vld [vmem:[%s334 + $0x18] sm:$0xf]
      %v389 = vld [vmem:[%s334 + $0x1c] sm:$0xf]
      %v390 = vld [vmem:[%s334 + $0x20] sm:$0xf]
      %v391 = vld [vmem:[%s334 + $0x24] sm:$0xf]
      %v392 = vld [vmem:[%s334 + $0x28] sm:$0xf]
      %v393 = vld [vmem:[%s334 + $0x2c] sm:$0xf]
      %v394 = vld [vmem:[%s334 + $0x30] sm:$0xf]
      %v395 = vld [vmem:[%s334 + $0x34] sm:$0xf]
      %v396 = vld [vmem:[%s334 + $0x38] sm:$0xf]
      %v397 = vld [vmem:[%s334 + $0x3c] sm:$0xf]
      %v398 = vld [vmem:[%s358] sm:$0xff]
      %v399 = vld [vmem:[%s358 + $0x8] sm:$0xff]
      %v400 = vlaneseq
      %v401 = vshrl.u32 %v400, 7
      %v402 = vadd.s32 %v401, 8
      %v403 = vstv %s381
      %v404 = vadd.s32 %v403, %v401
      %v405 = vadd.s32 %v403, %v402
      %v406 = vcvt.s32.f32 %v404
      %v407 = vcvt.s32.f32 %v405
      %v408 = vmul.f32 %v406, 2.0
      %v409 = vmul.f32 %v407, 2.0
      %v410 = vrcp.pop 15.0
      %v411 = vmul.f32 %v408, %v410
      %v412 = vmul.f32 %v409, %v410
      %v413 = vsub.f32 %v411, 1.0
      %v414 = vsub.f32 %v412, 1.0
      %v415 = vadd.f32 %v413, 1.0
      %v416 = vadd.f32 %v414, 1.0
      %v417 = vmul.f32 %v415, 16.0
      %v418 = vmul.f32 %v416, 16.0
      %v419 = vsub.f32 %v417, 1.0
      %v420 = vsub.f32 %v418, 1.0
      %v421 = vmul.f32 %v419, 0.5
      %v422 = vmul.f32 %v420, 0.5
      %v423 = vfloor.f32 %v421
      %v424 = vfloor.f32 %v422
      %v425 = vsub.f32 %v421, %v423
      %v426 = vsub.f32 %v422, %v424
      %v427 = vsub.f32 1.0, %v425
      %v428 = vsub.f32 1.0, %v426
      %v429 = vcvt.f32.s32.to.zero.pseudo %v423
      %v430 = vcvt.f32.s32.to.zero.pseudo %v424
      %v431 = vsub.s32 %v404, 1
      %v432 = vsub.s32 %v405, 1
      %vm433 = vcmp.eq.s32.totalorder %v429, %v431
      %vm434 = vcmp.eq.s32.totalorder %v430, %v432
      %vm435 = vcmp.ge.s32.totalorder %v404, 1
      %vm436 = vcmp.ge.s32.totalorder %v405, 1
      %vm437 = vmand %vm433, %vm435
      %vm438 = vmand %vm434, %vm436
      %v439 = vsel %vm437, %v427, 0.0
      %v440 = vsel %vm438, %v428, 0.0
      %v441 = vsel %vm433, %v425, %v427
      %v442 = vsel %vm434, %v426, %v428
      %vm443 = vmxor %vm433, 1
      %vm444 = vmxor %vm434, 1
      %vm445 = vcmp.le.s32.totalorder %v404, 14
      %vm446 = vcmp.le.s32.totalorder %v405, 14
      %vm447 = vmand %vm443, %vm445
      %vm448 = vmand %vm444, %vm446
      %v449 = vsel %vm447, %v425, 0.0
      %v450 = vsel %vm448, %v426, 0.0
      %v451 = vld [vmem:[%s342] sm:$0xf]
      %v452 = vld [vmem:[%s349] sm:$0xf]
      %v455 = vlaneseq
      %v456 = vshrl.u32 %v455, 7
      %v457 = vsub.s32 0, %v456
      %v458 = vrot.slane %v441, %v457
      %v459 = vlaneseq
      %v460 = vshrl.u32 %v459, 7
      %v461 = vsub.s32 1, %v460
      %v462 = vrot.slane %v441, %v461
      %v463 = vlaneseq
      %v464 = vshrl.u32 %v463, 7
      %v465 = vsub.s32 2, %v464
      %v466 = vrot.slane %v441, %v465
      %v467 = vlaneseq
      %v468 = vshrl.u32 %v467, 7
      %v469 = vsub.s32 3, %v468
      %v470 = vrot.slane %v441, %v469
      %v471 = vlaneseq
      %v472 = vshrl.u32 %v471, 7
      %v473 = vsub.s32 4, %v472
      %v474 = vrot.slane %v441, %v473
      %v475 = vlaneseq
      %v476 = vshrl.u32 %v475, 7
      %v477 = vsub.s32 5, %v476
      %v478 = vrot.slane %v441, %v477
      %v479 = vlaneseq
      %v480 = vshrl.u32 %v479, 7
      %v481 = vsub.s32 6, %v480
      %v482 = vrot.slane %v441, %v481
      %v483 = vlaneseq
      %v484 = vshrl.u32 %v483, 7
      %v485 = vsub.s32 7, %v484
      %v486 = vrot.slane %v441, %v485
      %v487 = vlaneseq
      %v488 = vshrl.u32 %v487, 7
      %v489 = vsub.s32 0, %v488
      %v490 = vrot.slane %v442, %v489
      %v491 = vlaneseq
      %v492 = vshrl.u32 %v491, 7
      %v493 = vsub.s32 1, %v492
      %v494 = vrot.slane %v442, %v493
      %v495 = vlaneseq
      %v496 = vshrl.u32 %v495, 7
      %v497 = vsub.s32 2, %v496
      %v498 = vrot.slane %v442, %v497
      %v499 = vlaneseq
      %v500 = vshrl.u32 %v499, 7
      %v501 = vsub.s32 3, %v500
      %v502 = vrot.slane %v442, %v501
      %v503 = vlaneseq
      %v504 = vshrl.u32 %v503, 7
      %v505 = vsub.s32 4, %v504
      %v506 = vrot.slane %v442, %v505
      %v507 = vlaneseq
      %v508 = vshrl.u32 %v507, 7
      %v509 = vsub.s32 5, %v508
      %v510 = vrot.slane %v442, %v509
      %v511 = vlaneseq
      %v512 = vshrl.u32 %v511, 7
      %v513 = vsub.s32 6, %v512
      %v514 = vrot.slane %v442, %v513
      %v515 = vlaneseq
      %v516 = vshrl.u32 %v515, 7
      %v517 = vsub.s32 7, %v516
      %v518 = vrot.slane %v442, %v517
      %v535 = vmul.f32 %v458, %v382
      %v536 = vmul.f32 %v462, %v383
      %v537 = vmul.f32 %v466, %v384
      %v538 = vmul.f32 %v470, %v385
      %v539 = vmul.f32 %v474, %v386
      %v540 = vmul.f32 %v478, %v387
      %v541 = vmul.f32 %v482, %v388
      %v542 = vmul.f32 %v486, %v389
      %v543 = vmul.f32 %v490, %v390
      %v544 = vmul.f32 %v494, %v391
      %v545 = vmul.f32 %v498, %v392
      %v546 = vmul.f32 %v502, %v393
      %v547 = vmul.f32 %v506, %v394
      %v548 = vmul.f32 %v510, %v395
      %v549 = vmul.f32 %v514, %v396
      %v550 = vmul.f32 %v518, %v397
      %v553 = vlaneseq
      %v554 = vshrl.u32 %v553, 7
      %v555 = vsub.s32 0, %v554
      %v556 = vrot.slane %v439, %v555
      %v557 = vlaneseq
      %v558 = vshrl.u32 %v557, 7
      %v559 = vsub.s32 1, %v558
      %v560 = vrot.slane %v439, %v559
      %v561 = vlaneseq
      %v562 = vshrl.u32 %v561, 7
      %v563 = vsub.s32 2, %v562
      %v564 = vrot.slane %v439, %v563
      %v565 = vlaneseq
      %v566 = vshrl.u32 %v565, 7
      %v567 = vsub.s32 3, %v566
      %v568 = vrot.slane %v439, %v567
      %v569 = vlaneseq
      %v570 = vshrl.u32 %v569, 7
      %v571 = vsub.s32 4, %v570
      %v572 = vrot.slane %v439, %v571
      %v573 = vlaneseq
      %v574 = vshrl.u32 %v573, 7
      %v575 = vsub.s32 5, %v574
      %v576 = vrot.slane %v439, %v575
      %v577 = vlaneseq
      %v578 = vshrl.u32 %v577, 7
      %v579 = vsub.s32 6, %v578
      %v580 = vrot.slane %v439, %v579
      %v581 = vlaneseq
      %v582 = vshrl.u32 %v581, 7
      %v583 = vsub.s32 7, %v582
      %v584 = vrot.slane %v439, %v583
      %v585 = vlaneseq
      %v586 = vshrl.u32 %v585, 7
      %v587 = vsub.s32 0, %v586
      %v588 = vrot.slane %v440, %v587
      %v589 = vlaneseq
      %v590 = vshrl.u32 %v589, 7
      %v591 = vsub.s32 1, %v590
      %v592 = vrot.slane %v440, %v591
      %v593 = vlaneseq
      %v594 = vshrl.u32 %v593, 7
      %v595 = vsub.s32 2, %v594
      %v596 = vrot.slane %v440, %v595
      %v597 = vlaneseq
      %v598 = vshrl.u32 %v597, 7
      %v599 = vsub.s32 3, %v598
      %v600 = vrot.slane %v440, %v599
      %v601 = vlaneseq
      %v602 = vshrl.u32 %v601, 7
      %v603 = vsub.s32 4, %v602
      %v604 = vrot.slane %v440, %v603
      %v605 = vlaneseq
      %v606 = vshrl.u32 %v605, 7
      %v607 = vsub.s32 5, %v606
      %v608 = vrot.slane %v440, %v607
      %v609 = vlaneseq
      %v610 = vshrl.u32 %v609, 7
      %v611 = vsub.s32 6, %v610
      %v612 = vrot.slane %v440, %v611
      %v613 = vlaneseq
      %v614 = vshrl.u32 %v613, 7
      %v615 = vsub.s32 7, %v614
      %v616 = vrot.slane %v440, %v615
      %v633 = vmul.f32 %v556, %v451
      %v634 = vmul.f32 %v560, %v382
      %v635 = vmul.f32 %v564, %v383
      %v636 = vmul.f32 %v568, %v384
      %v637 = vmul.f32 %v572, %v385
      %v638 = vmul.f32 %v576, %v386
      %v639 = vmul.f32 %v580, %v387
      %v640 = vmul.f32 %v584, %v388
      %v641 = vmul.f32 %v588, %v389
      %v642 = vmul.f32 %v592, %v390
      %v643 = vmul.f32 %v596, %v391
      %v644 = vmul.f32 %v600, %v392
      %v645 = vmul.f32 %v604, %v393
      %v646 = vmul.f32 %v608, %v394
      %v647 = vmul.f32 %v612, %v395
      %v648 = vmul.f32 %v616, %v396
      %v649 = vadd.f32 %v535, %v633
      %v650 = vadd.f32 %v536, %v634
      %v651 = vadd.f32 %v537, %v635
      %v652 = vadd.f32 %v538, %v636
      %v653 = vadd.f32 %v539, %v637
      %v654 = vadd.f32 %v540, %v638
      %v655 = vadd.f32 %v541, %v639
      %v656 = vadd.f32 %v542, %v640
      %v657 = vadd.f32 %v543, %v641
      %v658 = vadd.f32 %v544, %v642
      %v659 = vadd.f32 %v545, %v643
      %v660 = vadd.f32 %v546, %v644
      %v661 = vadd.f32 %v547, %v645
      %v662 = vadd.f32 %v548, %v646
      %v663 = vadd.f32 %v549, %v647
      %v664 = vadd.f32 %v550, %v648
      %v667 = vlaneseq
      %v668 = vshrl.u32 %v667, 7
      %v669 = vsub.s32 0, %v668
      %v670 = vrot.slane %v449, %v669
      %v671 = vlaneseq
      %v672 = vshrl.u32 %v671, 7
      %v673 = vsub.s32 1, %v672
      %v674 = vrot.slane %v449, %v673
      %v675 = vlaneseq
      %v676 = vshrl.u32 %v675, 7
      %v677 = vsub.s32 2, %v676
      %v678 = vrot.slane %v449, %v677
      %v679 = vlaneseq
      %v680 = vshrl.u32 %v679, 7
      %v681 = vsub.s32 3, %v680
      %v682 = vrot.slane %v449, %v681
      %v683 = vlaneseq
      %v684 = vshrl.u32 %v683, 7
      %v685 = vsub.s32 4, %v684
      %v686 = vrot.slane %v449, %v685
      %v687 = vlaneseq
      %v688 = vshrl.u32 %v687, 7
      %v689 = vsub.s32 5, %v688
      %v690 = vrot.slane %v449, %v689
      %v691 = vlaneseq
      %v692 = vshrl.u32 %v691, 7
      %v693 = vsub.s32 6, %v692
      %v694 = vrot.slane %v449, %v693
      %v695 = vlaneseq
      %v696 = vshrl.u32 %v695, 7
      %v697 = vsub.s32 7, %v696
      %v698 = vrot.slane %v449, %v697
      %v699 = vlaneseq
      %v700 = vshrl.u32 %v699, 7
      %v701 = vsub.s32 0, %v700
      %v702 = vrot.slane %v450, %v701
      %v703 = vlaneseq
      %v704 = vshrl.u32 %v703, 7
      %v705 = vsub.s32 1, %v704
      %v706 = vrot.slane %v450, %v705
      %v707 = vlaneseq
      %v708 = vshrl.u32 %v707, 7
      %v709 = vsub.s32 2, %v708
      %v710 = vrot.slane %v450, %v709
      %v711 = vlaneseq
      %v712 = vshrl.u32 %v711, 7
      %v713 = vsub.s32 3, %v712
      %v714 = vrot.slane %v450, %v713
      %v715 = vlaneseq
      %v716 = vshrl.u32 %v715, 7
      %v717 = vsub.s32 4, %v716
      %v718 = vrot.slane %v450, %v717
      %v719 = vlaneseq
      %v720 = vshrl.u32 %v719, 7
      %v721 = vsub.s32 5, %v720
      %v722 = vrot.slane %v450, %v721
      %v723 = vlaneseq
      %v724 = vshrl.u32 %v723, 7
      %v725 = vsub.s32 6, %v724
      %v726 = vrot.slane %v450, %v725
      %v727 = vlaneseq
      %v728 = vshrl.u32 %v727, 7
      %v729 = vsub.s32 7, %v728
      %v730 = vrot.slane %v450, %v729
      %v747 = vmul.f32 %v670, %v383
      %v748 = vmul.f32 %v674, %v384
      %v749 = vmul.f32 %v678, %v385
      %v750 = vmul.f32 %v682, %v386
      %v751 = vmul.f32 %v686, %v387
      %v752 = vmul.f32 %v690, %v388
      %v753 = vmul.f32 %v694, %v389
      %v754 = vmul.f32 %v698, %v390
      %v755 = vmul.f32 %v702, %v391
      %v756 = vmul.f32 %v706, %v392
      %v757 = vmul.f32 %v710, %v393
      %v758 = vmul.f32 %v714, %v394
      %v759 = vmul.f32 %v718, %v395
      %v760 = vmul.f32 %v722, %v396
      %v761 = vmul.f32 %v726, %v397
      %v762 = vmul.f32 %v730, %v452
      %v763 = vadd.f32 %v649, %v747
      %v764 = vadd.f32 %v650, %v748
      %v765 = vadd.f32 %v651, %v749
      %v766 = vadd.f32 %v652, %v750
      %v767 = vadd.f32 %v653, %v751
      %v768 = vadd.f32 %v654, %v752
      %v769 = vadd.f32 %v655, %v753
      %v770 = vadd.f32 %v656, %v754
      %v771 = vadd.f32 %v657, %v755
      %v772 = vadd.f32 %v658, %v756
      %v773 = vadd.f32 %v659, %v757
      %v774 = vadd.f32 %v660, %v758
      %v775 = vadd.f32 %v661, %v759
      %v776 = vadd.f32 %v662, %v760
      %v777 = vadd.f32 %v663, %v761
      %v778 = vadd.f32 %v664, %v762
      %v779 = vpack.c.bf16 %v763, %v763
      %v780 = vpack.c.bf16 %v764, %v764
      %v781 = vpack.c.bf16 %v765, %v765
      %v782 = vpack.c.bf16 %v766, %v766
      %v783 = vpack.c.bf16 %v767, %v767
      %v784 = vpack.c.bf16 %v768, %v768
      %v785 = vpack.c.bf16 %v769, %v769
      %v786 = vpack.c.bf16 %v770, %v770
      %v787 = vpack.c.bf16 %v771, %v771
      %v788 = vpack.c.bf16 %v772, %v772
      %v789 = vpack.c.bf16 %v773, %v773
      %v790 = vpack.c.bf16 %v774, %v774
      %v791 = vpack.c.bf16 %v775, %v775
      %v792 = vpack.c.bf16 %v776, %v776
      %v793 = vpack.c.bf16 %v777, %v777
      %v794 = vpack.c.bf16 %v778, %v778
      %v795 = vlaneseq
      %v796 = vand.u32 %v795, 127
      %v797 = vcvt.s32.f32 %v796
      %v798 = vsub.f32 %v797, %v398
      %v799 = vsub.f32 %v797, %v399
      %v800 = vmul.f32 %v798, 2.0
      %v801 = vmul.f32 %v799, 2.0
      %v802 = vmul.f32 %v800, %v410
      %v803 = vmul.f32 %v801, %v410
      %v804 = vsub.f32 %v802, 1.0
      %v805 = vsub.f32 %v803, 1.0
      %v806 = vand.u32 2147483647, %v804
      %v807 = vand.u32 2147483647, %v805
      %vm808 = vcmp.le.f32.partialorder %v806, 1.0
      %vm809 = vcmp.le.f32.partialorder %v807, 1.0
      %v810 = vsel %vm808, 1, 0
      %v811 = vsel %vm809, 1, 0
      %v812 = vpack.c.b16 %v810, %v810
      %v813 = vpack.c.b8 %v812, %v812
      %v814 = vpack.c.b16 %v811, %v811
      %v815 = vpack.c.b8 %v814, %v814
      %vm816 = vcmask 123904
      %817 = vst.msk [vmem:[%s378] sm:$0x3] %vm816, %v813
      %818 = vst.msk [vmem:[%s378 + $0x2] sm:$0x3] %vm816, %v815
      %v819 = vadd.f32 %v804, 1.0
      %v820 = vadd.f32 %v805, 1.0
      %v821 = vmul.f32 %v819, 16.0
      %v822 = vmul.f32 %v820, 16.0
      %v823 = vsub.f32 %v821, 1.0
      %v824 = vsub.f32 %v822, 1.0
      %v825 = vmul.f32 %v823, 0.5
      %v826 = vmul.f32 %v824, 0.5
      %v827 = vlaneseq
      %v828 = vshrl.u32 %v827, 7
      %v829 = vsub.s32 0, %v828
      %v830 = vrot.slane %v825, %v829
      %832 = vbcast.lane.b32.xlu0 %v830, 256
      %v833 = vpop.permute.xlu0 %832
      %s835 = sor.u32 256, 8
      %836 = vbcast.lane.b32.xlu0 %v830, %s835
      %v837 = vpop.permute.xlu0 %836
      %v838 = vlaneseq
      %v839 = vshrl.u32 %v838, 7
      %v840 = vsub.s32 1, %v839
      %v841 = vrot.slane %v825, %v840
      %843 = vbcast.lane.b32.xlu0 %v841, 256
      %v844 = vpop.permute.xlu0 %843
      %s846 = sor.u32 256, 8
      %847 = vbcast.lane.b32.xlu0 %v841, %s846
      %v848 = vpop.permute.xlu0 %847
      %v849 = vlaneseq
      %v850 = vshrl.u32 %v849, 7
      %v851 = vsub.s32 2, %v850
      %v852 = vrot.slane %v825, %v851
      %854 = vbcast.lane.b32.xlu0 %v852, 256
      %v855 = vpop.permute.xlu0 %854
      %s857 = sor.u32 256, 8
      %858 = vbcast.lane.b32.xlu0 %v852, %s857
      %v859 = vpop.permute.xlu0 %858
      %v860 = vlaneseq
      %v861 = vshrl.u32 %v860, 7
      %v862 = vsub.s32 3, %v861
      %v863 = vrot.slane %v825, %v862
      %865 = vbcast.lane.b32.xlu0 %v863, 256
      %v866 = vpop.permute.xlu0 %865
      %s868 = sor.u32 256, 8
      %869 = vbcast.lane.b32.xlu0 %v863, %s868
      %v870 = vpop.permute.xlu0 %869
      %v871 = vlaneseq
      %v872 = vshrl.u32 %v871, 7
      %v873 = vsub.s32 4, %v872
      %v874 = vrot.slane %v825, %v873
      %876 = vbcast.lane.b32.xlu0 %v874, 256
      %v877 = vpop.permute.xlu0 %876
      %s879 = sor.u32 256, 8
      %880 = vbcast.lane.b32.xlu0 %v874, %s879
      %v881 = vpop.permute.xlu0 %880
      %v882 = vlaneseq
      %v883 = vshrl.u32 %v882, 7
      %v884 = vsub.s32 5, %v883
      %v885 = vrot.slane %v825, %v884
      %887 = vbcast.lane.b32.xlu0 %v885, 256
      %v888 = vpop.permute.xlu0 %887
      %s890 = sor.u32 256, 8
      %891 = vbcast.lane.b32.xlu0 %v885, %s890
      %v892 = vpop.permute.xlu0 %891
      %v893 = vlaneseq
      %v894 = vshrl.u32 %v893, 7
      %v895 = vsub.s32 6, %v894
      %v896 = vrot.slane %v825, %v895
      %898 = vbcast.lane.b32.xlu0 %v896, 256
      %v899 = vpop.permute.xlu0 %898
      %s901 = sor.u32 256, 8
      %902 = vbcast.lane.b32.xlu0 %v896, %s901
      %v903 = vpop.permute.xlu0 %902
      %v904 = vlaneseq
      %v905 = vshrl.u32 %v904, 7
      %v906 = vsub.s32 7, %v905
      %v907 = vrot.slane %v825, %v906
      %909 = vbcast.lane.b32.xlu0 %v907, 256
      %v910 = vpop.permute.xlu0 %909
      %s912 = sor.u32 256, 8
      %913 = vbcast.lane.b32.xlu0 %v907, %s912
      %v914 = vpop.permute.xlu0 %913
      %v915 = vlaneseq
      %v916 = vshrl.u32 %v915, 7
      %v917 = vsub.s32 0, %v916
      %v918 = vrot.slane %v826, %v917
      %920 = vbcast.lane.b32.xlu0 %v918, 256
      %v921 = vpop.permute.xlu0 %920
      %s923 = sor.u32 256, 8
      %924 = vbcast.lane.b32.xlu0 %v918, %s923
      %v925 = vpop.permute.xlu0 %924
      %v926 = vlaneseq
      %v927 = vshrl.u32 %v926, 7
      %v928 = vsub.s32 1, %v927
      %v929 = vrot.slane %v826, %v928
      %931 = vbcast.lane.b32.xlu0 %v929, 256
      %v932 = vpop.permute.xlu0 %931
      %s934 = sor.u32 256, 8
      %935 = vbcast.lane.b32.xlu0 %v929, %s934
      %v936 = vpop.permute.xlu0 %935
      %v937 = vlaneseq
      %v938 = vshrl.u32 %v937, 7
      %v939 = vsub.s32 2, %v938
      %v940 = vrot.slane %v826, %v939
      %942 = vbcast.lane.b32.xlu0 %v940, 256
      %v943 = vpop.permute.xlu0 %942
      %s945 = sor.u32 256, 8
      %946 = vbcast.lane.b32.xlu0 %v940, %s945
      %v947 = vpop.permute.xlu0 %946
      %v948 = vlaneseq
      %v949 = vshrl.u32 %v948, 7
      %v950 = vsub.s32 3, %v949
      %v951 = vrot.slane %v826, %v950
      %953 = vbcast.lane.b32.xlu0 %v951, 256
      %v954 = vpop.permute.xlu0 %953
      %s956 = sor.u32 256, 8
      %957 = vbcast.lane.b32.xlu0 %v951, %s956
      %v958 = vpop.permute.xlu0 %957
      %v959 = vlaneseq
      %v960 = vshrl.u32 %v959, 7
      %v961 = vsub.s32 4, %v960
      %v962 = vrot.slane %v826, %v961
      %964 = vbcast.lane.b32.xlu0 %v962, 256
      %v965 = vpop.permute.xlu0 %964
      %s967 = sor.u32 256, 8
      %968 = vbcast.lane.b32.xlu0 %v962, %s967
      %v969 = vpop.permute.xlu0 %968
      %v970 = vlaneseq
      %v971 = vshrl.u32 %v970, 7
      %v972 = vsub.s32 5, %v971
      %v973 = vrot.slane %v826, %v972
      %975 = vbcast.lane.b32.xlu0 %v973, 256
      %v976 = vpop.permute.xlu0 %975
      %s978 = sor.u32 256, 8
      %979 = vbcast.lane.b32.xlu0 %v973, %s978
      %v980 = vpop.permute.xlu0 %979
      %v981 = vlaneseq
      %v982 = vshrl.u32 %v981, 7
      %v983 = vsub.s32 6, %v982
      %v984 = vrot.slane %v826, %v983
      %986 = vbcast.lane.b32.xlu0 %v984, 256
      %v987 = vpop.permute.xlu0 %986
      %s989 = sor.u32 256, 8
      %990 = vbcast.lane.b32.xlu0 %v984, %s989
      %v991 = vpop.permute.xlu0 %990
      %v992 = vlaneseq
      %v993 = vshrl.u32 %v992, 7
      %v994 = vsub.s32 7, %v993
      %v995 = vrot.slane %v826, %v994
      %997 = vbcast.lane.b32.xlu0 %v995, 256
      %v998 = vpop.permute.xlu0 %997
      %s1000 = sor.u32 256, 8
      %1001 = vbcast.lane.b32.xlu0 %v995, %s1000
      %v1002 = vpop.permute.xlu0 %1001
      %v1003 = vsub.f32 %v797, %v833
      %v1004 = vsub.f32 %v797, %v837
      %v1005 = vsub.f32 %v797, %v844
      %v1006 = vsub.f32 %v797, %v848
      %v1007 = vsub.f32 %v797, %v855
      %v1008 = vsub.f32 %v797, %v859
      %v1009 = vsub.f32 %v797, %v866
      %v1010 = vsub.f32 %v797, %v870
      %v1011 = vsub.f32 %v797, %v877
      %v1012 = vsub.f32 %v797, %v881
      %v1013 = vsub.f32 %v797, %v888
      %v1014 = vsub.f32 %v797, %v892
      %v1015 = vsub.f32 %v797, %v899
      %v1016 = vsub.f32 %v797, %v903
      %v1017 = vsub.f32 %v797, %v910
      %v1018 = vsub.f32 %v797, %v914
      %v1019 = vsub.f32 %v797, %v921
      %v1020 = vsub.f32 %v797, %v925
      %v1021 = vsub.f32 %v797, %v932
      %v1022 = vsub.f32 %v797, %v936
      %v1023 = vsub.f32 %v797, %v943
      %v1024 = vsub.f32 %v797, %v947
      %v1025 = vsub.f32 %v797, %v954
      %v1026 = vsub.f32 %v797, %v958
      %v1027 = vsub.f32 %v797, %v965
      %v1028 = vsub.f32 %v797, %v969
      %v1029 = vsub.f32 %v797, %v976
      %v1030 = vsub.f32 %v797, %v980
      %v1031 = vsub.f32 %v797, %v987
      %v1032 = vsub.f32 %v797, %v991
      %v1033 = vsub.f32 %v797, %v998
      %v1034 = vsub.f32 %v797, %v1002
      %v1035 = vand.u32 2147483647, %v1003
      %v1036 = vand.u32 2147483647, %v1004
      %v1037 = vand.u32 2147483647, %v1005
      %v1038 = vand.u32 2147483647, %v1006
      %v1039 = vand.u32 2147483647, %v1007
      %v1040 = vand.u32 2147483647, %v1008
      %v1041 = vand.u32 2147483647, %v1009
      %v1042 = vand.u32 2147483647, %v1010
      %v1043 = vand.u32 2147483647, %v1011
      %v1044 = vand.u32 2147483647, %v1012
      %v1045 = vand.u32 2147483647, %v1013
      %v1046 = vand.u32 2147483647, %v1014
      %v1047 = vand.u32 2147483647, %v1015
      %v1048 = vand.u32 2147483647, %v1016
      %v1049 = vand.u32 2147483647, %v1017
      %v1050 = vand.u32 2147483647, %v1018
      %v1051 = vand.u32 2147483647, %v1019
      %v1052 = vand.u32 2147483647, %v1020
      %v1053 = vand.u32 2147483647, %v1021
      %v1054 = vand.u32 2147483647, %v1022
      %v1055 = vand.u32 2147483647, %v1023
      %v1056 = vand.u32 2147483647, %v1024
      %v1057 = vand.u32 2147483647, %v1025
      %v1058 = vand.u32 2147483647, %v1026
      %v1059 = vand.u32 2147483647, %v1027
      %v1060 = vand.u32 2147483647, %v1028
      %v1061 = vand.u32 2147483647, %v1029
      %v1062 = vand.u32 2147483647, %v1030
      %v1063 = vand.u32 2147483647, %v1031
      %v1064 = vand.u32 2147483647, %v1032
      %v1065 = vand.u32 2147483647, %v1033
      %v1066 = vand.u32 2147483647, %v1034
      %v1067 = vsub.f32 1.0, %v1035
      %v1068 = vsub.f32 1.0, %v1036
      %v1069 = vsub.f32 1.0, %v1037
      %v1070 = vsub.f32 1.0, %v1038
      %v1071 = vsub.f32 1.0, %v1039
      %v1072 = vsub.f32 1.0, %v1040
      %v1073 = vsub.f32 1.0, %v1041
      %v1074 = vsub.f32 1.0, %v1042
      %v1075 = vsub.f32 1.0, %v1043
      %v1076 = vsub.f32 1.0, %v1044
      %v1077 = vsub.f32 1.0, %v1045
      %v1078 = vsub.f32 1.0, %v1046
      %v1079 = vsub.f32 1.0, %v1047
      %v1080 = vsub.f32 1.0, %v1048
      %v1081 = vsub.f32 1.0, %v1049
      %v1082 = vsub.f32 1.0, %v1050
      %v1083 = vsub.f32 1.0, %v1051
      %v1084 = vsub.f32 1.0, %v1052
      %v1085 = vsub.f32 1.0, %v1053
      %v1086 = vsub.f32 1.0, %v1054
      %v1087 = vsub.f32 1.0, %v1055
      %v1088 = vsub.f32 1.0, %v1056
      %v1089 = vsub.f32 1.0, %v1057
      %v1090 = vsub.f32 1.0, %v1058
      %v1091 = vsub.f32 1.0, %v1059
      %v1092 = vsub.f32 1.0, %v1060
      %v1093 = vsub.f32 1.0, %v1061
      %v1094 = vsub.f32 1.0, %v1062
      %v1095 = vsub.f32 1.0, %v1063
      %v1096 = vsub.f32 1.0, %v1064
      %v1097 = vsub.f32 1.0, %v1065
      %v1098 = vsub.f32 1.0, %v1066
      %v1099 = vmax.f32 %v1067, 0.0
      %v1100 = vmax.f32 %v1068, 0.0
      %v1101 = vmax.f32 %v1069, 0.0
      %v1102 = vmax.f32 %v1070, 0.0
      %v1103 = vmax.f32 %v1071, 0.0
      %v1104 = vmax.f32 %v1072, 0.0
      %v1105 = vmax.f32 %v1073, 0.0
      %v1106 = vmax.f32 %v1074, 0.0
      %v1107 = vmax.f32 %v1075, 0.0
      %v1108 = vmax.f32 %v1076, 0.0
      %v1109 = vmax.f32 %v1077, 0.0
      %v1110 = vmax.f32 %v1078, 0.0
      %v1111 = vmax.f32 %v1079, 0.0
      %v1112 = vmax.f32 %v1080, 0.0
      %v1113 = vmax.f32 %v1081, 0.0
      %v1114 = vmax.f32 %v1082, 0.0
      %v1115 = vmax.f32 %v1083, 0.0
      %v1116 = vmax.f32 %v1084, 0.0
      %v1117 = vmax.f32 %v1085, 0.0
      %v1118 = vmax.f32 %v1086, 0.0
      %v1119 = vmax.f32 %v1087, 0.0
      %v1120 = vmax.f32 %v1088, 0.0
      %v1121 = vmax.f32 %v1089, 0.0
      %v1122 = vmax.f32 %v1090, 0.0
      %v1123 = vmax.f32 %v1091, 0.0
      %v1124 = vmax.f32 %v1092, 0.0
      %v1125 = vmax.f32 %v1093, 0.0
      %v1126 = vmax.f32 %v1094, 0.0
      %v1127 = vmax.f32 %v1095, 0.0
      %v1128 = vmax.f32 %v1096, 0.0
      %v1129 = vmax.f32 %v1097, 0.0
      %v1130 = vmax.f32 %v1098, 0.0
      %v1131 = vpack.c.bf16 %v1100, %v1099
      %v1132 = vpack.c.bf16 %v1102, %v1101
      %v1133 = vpack.c.bf16 %v1104, %v1103
      %v1134 = vpack.c.bf16 %v1106, %v1105
      %v1135 = vpack.c.bf16 %v1108, %v1107
      %v1136 = vpack.c.bf16 %v1110, %v1109
      %v1137 = vpack.c.bf16 %v1112, %v1111
      %v1138 = vpack.c.bf16 %v1114, %v1113
      %v1139 = vpack.c.bf16 %v1116, %v1115
      %v1140 = vpack.c.bf16 %v1118, %v1117
      %v1141 = vpack.c.bf16 %v1120, %v1119
      %v1142 = vpack.c.bf16 %v1122, %v1121
      %v1143 = vpack.c.bf16 %v1124, %v1123
      %v1144 = vpack.c.bf16 %v1126, %v1125
      %v1145 = vpack.c.bf16 %v1128, %v1127
      %v1146 = vpack.c.bf16 %v1130, %v1129
      %vm1147 = vcmask 130048
      %v1149 = vsel %vm1147, %v779, 0
      %v1152 = vsel %vm1147, %v1131, 0
      %1154 = vmatprep.subr.bf16.mxu0 0
      %1155 = vmatpush1.bf16.xpose.msra.mxu0 %v1152
      %1156 = vmatprep.subr.bf16.mxu0 0
      %1157 = vmatpush1.bf16.xpose.msra.mxu0 0
      %1158 = vmatprep.subr.bf16.mxu0 0
      %1159 = vmatpush1.bf16.xpose.msra.mxu0 0
      %1160 = vmatprep.subr.bf16.mxu0 0
      %1161 = vmatpush1.bf16.xpose.msra.mxu0 0
      %1162 = vmatprep.subr.bf16.mxu0 0
      %1163 = vmatpush1.bf16.xpose.msra.mxu0 0
      %1164 = vmatprep.subr.bf16.mxu0 0
      %1165 = vmatpush1.bf16.xpose.msra.mxu0 0
      %1166 = vmatprep.subr.bf16.mxu0 0
      %1167 = vmatpush1.bf16.xpose.msra.mxu0 0
      %1168 = vmatprep.subr.bf16.mxu0 0
      %1169 = vmatpush1.bf16.xpose.msra.mxu0 0
      %1170 = vmatprep.subr.bf16.mxu0 0
      %1171 = vmatpush1.bf16.xpose.msra.mxu0 0
      %1172 = vmatprep.subr.bf16.mxu0 0
      %1173 = vmatpush1.bf16.xpose.msra.mxu0 0
      %1174 = vmatprep.subr.bf16.mxu0 0
      %1175 = vmatpush1.bf16.xpose.msra.mxu0 0
      %1176 = vmatprep.subr.bf16.mxu0 0
      %1177 = vmatpush1.bf16.xpose.msra.mxu0 0
      %1178 = vmatprep.subr.bf16.mxu0 0
      %1179 = vmatpush1.bf16.xpose.msra.mxu0 0
      %1180 = vmatprep.subr.bf16.mxu0 0
      %1181 = vmatpush1.bf16.xpose.msra.mxu0 0
      %1182 = vmatprep.subr.bf16.mxu0 0
      %1183 = vmatpush1.bf16.xpose.msra.mxu0 0
      %1184 = vmatprep.subr.bf16.mxu0 0
      %1185 = vmatpush1.bf16.xpose.msra.mxu0 0
      %1186 = vmatprep.mubr.bf16.mxu0 0
      %1187 = vmatmul.mubr.bf16.gmra.mrb[0].mxu0 %v1149
      %v1188 = vpop.f32.mrb[0].mxu0
      %v1189 = vadd.f32 0.0, %v1188
      %v1190 = vpop.f32.mrb[0].mxu0
      %v1191 = vpop.f32.mrb[0].mxu0
      %v1192 = vpop.f32.mrb[0].mxu0
      %1193 = vdwg.mxu0
      %v1195 = vsel %vm1147, %v780, 0
      %v1198 = vsel %vm1147, %v1132, 0
      %1200 = vmatprep.subr.bf16.mxu0 0
      %1201 = vmatpush1.bf16.xpose.msra.mxu0 %v1198
      %1202 = vmatprep.subr.bf16.mxu0 0
      %1203 = vmatpush1.bf16.xpose.msra.mxu0 0
      %1204 = vmatprep.subr.bf16.mxu0 0
      %1205 = vmatpush1.bf16.xpose.msra.mxu0 0
      %1206 = vmatprep.subr.bf16.mxu0 0
      %1207 = vmatpush1.bf16.xpose.msra.mxu0 0
      %1208 = vmatprep.subr.bf16.mxu0 0
      %1209 = vmatpush1.bf16.xpose.msra.mxu0 0
      %1210 = vmatprep.subr.bf16.mxu0 0
      %1211 = vmatpush1.bf16.xpose.msra.mxu0 0
      %1212 = vmatprep.subr.bf16.mxu0 0
      %1213 = vmatpush1.bf16.xpose.msra.mxu0 0
      %1214 = vmatprep.subr.bf16.mxu0 0
      %1215 = vmatpush1.bf16.xpose.msra.mxu0 0
      %1216 = vmatprep.subr.bf16.mxu0 0
      %1217 = vmatpush1.bf16.xpose.msra.mxu0 0
      %1218 = vmatprep.subr.bf16.mxu0 0
      %1219 = vmatpush1.bf16.xpose.msra.mxu0 0
      %1220 = vmatprep.subr.bf16.mxu0 0
      %1221 = vmatpush1.bf16.xpose.msra.mxu0 0
      %1222 = vmatprep.subr.bf16.mxu0 0
      %1223 = vmatpush1.bf16.xpose.msra.mxu0 0
      %1224 = vmatprep.subr.bf16.mxu0 0
      %1225 = vmatpush1.bf16.xpose.msra.mxu0 0
      %1226 = vmatprep.subr.bf16.mxu0 0
      %1227 = vmatpush1.bf16.xpose.msra.mxu0 0
      %1228 = vmatprep.subr.bf16.mxu0 0
      %1229 = vmatpush1.bf16.xpose.msra.mxu0 0
      %1230 = vmatprep.subr.bf16.mxu0 0
      %1231 = vmatpush1.bf16.xpose.msra.mxu0 0
      %1232 = vmatprep.mubr.bf16.mxu0 0
      %1233 = vmatmul.mubr.bf16.gmra.mrb[0].mxu0 %v1195
      %v1234 = vpop.f32.mrb[0].mxu0
      %v1235 = vadd.f32 0.0, %v1234
      %v1236 = vpop.f32.mrb[0].mxu0
      %v1237 = vpop.f32.mrb[0].mxu0
      %v1238 = vpop.f32.mrb[0].mxu0
      %1239 = vdwg.mxu0
      %v1241 = vsel %vm1147, %v781, 0
      %v1244 = vsel %vm1147, %v1133, 0
      %1246 = vmatprep.subr.bf16.mxu0 0
      %1247 = vmatpush1.bf16.xpose.msra.mxu0 %v1244
      %1248 = vmatprep.subr.bf16.mxu0 0
      %1249 = vmatpush1.bf16.xpose.msra.mxu0 0
      %1250 = vmatprep.subr.bf16.mxu0 0
      %1251 = vmatpush1.bf16.xpose.msra.mxu0 0
      %1252 = vmatprep.subr.bf16.mxu0 0
      %1253 = vmatpush1.bf16.xpose.msra.mxu0 0
      %1254 = vmatprep.subr.bf16.mxu0 0
      %1255 = vmatpush1.bf16.xpose.msra.mxu0 0
      %1256 = vmatprep.subr.bf16.mxu0 0
      %1257 = vmatpush1.bf16.xpose.msra.mxu0 0
      %1258 = vmatprep.subr.bf16.mxu0 0
      %1259 = vmatpush1.bf16.xpose.msra.mxu0 0
      %1260 = vmatprep.subr.bf16.mxu0 0
      %1261 = vmatpush1.bf16.xpose.msra.mxu0 0
      %1262 = vmatprep.subr.bf16.mxu0 0
      %1263 = vmatpush1.bf16.xpose.msra.mxu0 0
      %1264 = vmatprep.subr.bf16.mxu0 0
      %1265 = vmatpush1.bf16.xpose.msra.mxu0 0
      %1266 = vmatprep.subr.bf16.mxu0 0
      %1267 = vmatpush1.bf16.xpose.msra.mxu0 0
      %1268 = vmatprep.subr.bf16.mxu0 0
      %1269 = vmatpush1.bf16.xpose.msra.mxu0 0
      %1270 = vmatprep.subr.bf16.mxu0 0
      %1271 = vmatpush1.bf16.xpose.msra.mxu0 0
      %1272 = vmatprep.subr.bf16.mxu0 0
      %1273 = vmatpush1.bf16.xpose.msra.mxu0 0
      %1274 = vmatprep.subr.bf16.mxu0 0
      %1275 = vmatpush1.bf16.xpose.msra.mxu0 0
      %1276 = vmatprep.subr.bf16.mxu0 0
      %1277 = vmatpush1.bf16.xpose.msra.mxu0 0
      %1278 = vmatprep.mubr.bf16.mxu0 0
      %1279 = vmatmul.mubr.bf16.gmra.mrb[0].mxu0 %v1241
      %v1280 = vpop.f32.mrb[0].mxu0
      %v1281 = vadd.f32 0.0, %v1280
      %v1282 = vpop.f32.mrb[0].mxu0
      %v1283 = vpop.f32.mrb[0].mxu0
      %v1284 = vpop.f32.mrb[0].mxu0
      %1285 = vdwg.mxu0
      %v1287 = vsel %vm1147, %v782, 0
      %v1290 = vsel %vm1147, %v1134, 0
      %1292 = vmatprep.subr.bf16.mxu0 0
      %1293 = vmatpush1.bf16.xpose.msra.mxu0 %v1290
      %1294 = vmatprep.subr.bf16.mxu0 0
      %1295 = vmatpush1.bf16.xpose.msra.mxu0 0
      %1296 = vmatprep.subr.bf16.mxu0 0
      %1297 = vmatpush1.bf16.xpose.msra.mxu0 0
      %1298 = vmatprep.subr.bf16.mxu0 0
      %1299 = vmatpush1.bf16.xpose.msra.mxu0 0
      %1300 = vmatprep.subr.bf16.mxu0 0
      %1301 = vmatpush1.bf16.xpose.msra.mxu0 0
      %1302 = vmatprep.subr.bf16.mxu0 0
      %1303 = vmatpush1.bf16.xpose.msra.mxu0 0
      %1304 = vmatprep.subr.bf16.mxu0 0
      %1305 = vmatpush1.bf16.xpose.msra.mxu0 0
      %1306 = vmatprep.subr.bf16.mxu0 0
      %1307 = vmatpush1.bf16.xpose.msra.mxu0 0
      %1308 = vmatprep.subr.bf16.mxu0 0
      %1309 = vmatpush1.bf16.xpose.msra.mxu0 0
      %1310 = vmatprep.subr.bf16.mxu0 0
      %1311 = vmatpush1.bf16.xpose.msra.mxu0 0
      %1312 = vmatprep.subr.bf16.mxu0 0
      %1313 = vmatpush1.bf16.xpose.msra.mxu0 0
      %1314 = vmatprep.subr.bf16.mxu0 0
      %1315 = vmatpush1.bf16.xpose.msra.mxu0 0
      %1316 = vmatprep.subr.bf16.mxu0 0
      %1317 = vmatpush1.bf16.xpose.msra.mxu0 0
      %1318 = vmatprep.subr.bf16.mxu0 0
      %1319 = vmatpush1.bf16.xpose.msra.mxu0 0
      %1320 = vmatprep.subr.bf16.mxu0 0
      %1321 = vmatpush1.bf16.xpose.msra.mxu0 0
      %1322 = vmatprep.subr.bf16.mxu0 0
      %1323 = vmatpush1.bf16.xpose.msra.mxu0 0
      %1324 = vmatprep.mubr.bf16.mxu0 0
      %1325 = vmatmul.mubr.bf16.gmra.mrb[0].mxu0 %v1287
      %v1326 = vpop.f32.mrb[0].mxu0
      %v1327 = vadd.f32 0.0, %v1326
      %v1328 = vpop.f32.mrb[0].mxu0
      %v1329 = vpop.f32.mrb[0].mxu0
      %v1330 = vpop.f32.mrb[0].mxu0
      %1331 = vdwg.mxu0
      %v1333 = vsel %vm1147, %v783, 0
      %v1336 = vsel %vm1147, %v1135, 0
      %1338 = vmatprep.subr.bf16.mxu0 0
      %1339 = vmatpush1.bf16.xpose.msra.mxu0 %v1336
      %1340 = vmatprep.subr.bf16.mxu0 0
      %1341 = vmatpush1.bf16.xpose.msra.mxu0 0
      %1342 = vmatprep.subr.bf16.mxu0 0
      %1343 = vmatpush1.bf16.xpose.msra.mxu0 0
      %1344 = vmatprep.subr.bf16.mxu0 0
      %1345 = vmatpush1.bf16.xpose.msra.mxu0 0
      %1346 = vmatprep.subr.bf16.mxu0 0
      %1347 = vmatpush1.bf16.xpose.msra.mxu0 0
      %1348 = vmatprep.subr.bf16.mxu0 0
      %1349 = vmatpush1.bf16.xpose.msra.mxu0 0
      %1350 = vmatprep.subr.bf16.mxu0 0
      %1351 = vmatpush1.bf16.xpose.msra.mxu0 0
      %1352 = vmatprep.subr.bf16.mxu0 0
      %1353 = vmatpush1.bf16.xpose.msra.mxu0 0
      %1354 = vmatprep.subr.bf16.mxu0 0
      %1355 = vmatpush1.bf16.xpose.msra.mxu0 0
      %1356 = vmatprep.subr.bf16.mxu0 0
      %1357 = vmatpush1.bf16.xpose.msra.mxu0 0
      %1358 = vmatprep.subr.bf16.mxu0 0
      %1359 = vmatpush1.bf16.xpose.msra.mxu0 0
      %1360 = vmatprep.subr.bf16.mxu0 0
      %1361 = vmatpush1.bf16.xpose.msra.mxu0 0
      %1362 = vmatprep.subr.bf16.mxu0 0
      %1363 = vmatpush1.bf16.xpose.msra.mxu0 0
      %1364 = vmatprep.subr.bf16.mxu0 0
      %1365 = vmatpush1.bf16.xpose.msra.mxu0 0
      %1366 = vmatprep.subr.bf16.mxu0 0
      %1367 = vmatpush1.bf16.xpose.msra.mxu0 0
      %1368 = vmatprep.subr.bf16.mxu0 0
      %1369 = vmatpush1.bf16.xpose.msra.mxu0 0
      %1370 = vmatprep.mubr.bf16.mxu0 0
      %1371 = vmatmul.mubr.bf16.gmra.mrb[0].mxu0 %v1333
      %v1372 = vpop.f32.mrb[0].mxu0
      %v1373 = vadd.f32 0.0, %v1372
      %v1374 = vpop.f32.mrb[0].mxu0
      %v1375 = vpop.f32.mrb[0].mxu0
      %v1376 = vpop.f32.mrb[0].mxu0
      %1377 = vdwg.mxu0
      %v1379 = vsel %vm1147, %v784, 0
      %v1382 = vsel %vm1147, %v1136, 0
      %1384 = vmatprep.subr.bf16.mxu0 0
      %1385 = vmatpush1.bf16.xpose.msra.mxu0 %v1382
      %1386 = vmatprep.subr.bf16.mxu0 0
      %1387 = vmatpush1.bf16.xpose.msra.mxu0 0
      %1388 = vmatprep.subr.bf16.mxu0 0
      %1389 = vmatpush1.bf16.xpose.msra.mxu0 0
      %1390 = vmatprep.subr.bf16.mxu0 0
      %1391 = vmatpush1.bf16.xpose.msra.mxu0 0
      %1392 = vmatprep.subr.bf16.mxu0 0
      %1393 = vmatpush1.bf16.xpose.msra.mxu0 0
      %1394 = vmatprep.subr.bf16.mxu0 0
      %1395 = vmatpush1.bf16.xpose.msra.mxu0 0
      %1396 = vmatprep.subr.bf16.mxu0 0
      %1397 = vmatpush1.bf16.xpose.msra.mxu0 0
      %1398 = vmatprep.subr.bf16.mxu0 0
      %1399 = vmatpush1.bf16.xpose.msra.mxu0 0
      %1400 = vmatprep.subr.bf16.mxu0 0
      %1401 = vmatpush1.bf16.xpose.msra.mxu0 0
      %1402 = vmatprep.subr.bf16.mxu0 0
      %1403 = vmatpush1.bf16.xpose.msra.mxu0 0
      %1404 = vmatprep.subr.bf16.mxu0 0
      %1405 = vmatpush1.bf16.xpose.msra.mxu0 0
      %1406 = vmatprep.subr.bf16.mxu0 0
      %1407 = vmatpush1.bf16.xpose.msra.mxu0 0
      %1408 = vmatprep.subr.bf16.mxu0 0
      %1409 = vmatpush1.bf16.xpose.msra.mxu0 0
      %1410 = vmatprep.subr.bf16.mxu0 0
      %1411 = vmatpush1.bf16.xpose.msra.mxu0 0
      %1412 = vmatprep.subr.bf16.mxu0 0
      %1413 = vmatpush1.bf16.xpose.msra.mxu0 0
      %1414 = vmatprep.subr.bf16.mxu0 0
      %1415 = vmatpush1.bf16.xpose.msra.mxu0 0
      %1416 = vmatprep.mubr.bf16.mxu0 0
      %1417 = vmatmul.mubr.bf16.gmra.mrb[0].mxu0 %v1379
      %v1418 = vpop.f32.mrb[0].mxu0
      %v1419 = vadd.f32 0.0, %v1418
      %v1420 = vpop.f32.mrb[0].mxu0
      %v1421 = vpop.f32.mrb[0].mxu0
      %v1422 = vpop.f32.mrb[0].mxu0
      %1423 = vdwg.mxu0
      %v1425 = vsel %vm1147, %v785, 0
      %v1428 = vsel %vm1147, %v1137, 0
      %1430 = vmatprep.subr.bf16.mxu0 0
      %1431 = vmatpush1.bf16.xpose.msra.mxu0 %v1428
      %1432 = vmatprep.subr.bf16.mxu0 0
      %1433 = vmatpush1.bf16.xpose.msra.mxu0 0
      %1434 = vmatprep.subr.bf16.mxu0 0
      %1435 = vmatpush1.bf16.xpose.msra.mxu0 0
      %1436 = vmatprep.subr.bf16.mxu0 0
      %1437 = vmatpush1.bf16.xpose.msra.mxu0 0
      %1438 = vmatprep.subr.bf16.mxu0 0
      %1439 = vmatpush1.bf16.xpose.msra.mxu0 0
      %1440 = vmatprep.subr.bf16.mxu0 0
      %1441 = vmatpush1.bf16.xpose.msra.mxu0 0
      %1442 = vmatprep.subr.bf16.mxu0 0
      %1443 = vmatpush1.bf16.xpose.msra.mxu0 0
      %1444 = vmatprep.subr.bf16.mxu0 0
      %1445 = vmatpush1.bf16.xpose.msra.mxu0 0
      %1446 = vmatprep.subr.bf16.mxu0 0
      %1447 = vmatpush1.bf16.xpose.msra.mxu0 0
      %1448 = vmatprep.subr.bf16.mxu0 0
      %1449 = vmatpush1.bf16.xpose.msra.mxu0 0
      %1450 = vmatprep.subr.bf16.mxu0 0
      %1451 = vmatpush1.bf16.xpose.msra.mxu0 0
      %1452 = vmatprep.subr.bf16.mxu0 0
      %1453 = vmatpush1.bf16.xpose.msra.mxu0 0
      %1454 = vmatprep.subr.bf16.mxu0 0
      %1455 = vmatpush1.bf16.xpose.msra.mxu0 0
      %1456 = vmatprep.subr.bf16.mxu0 0
      %1457 = vmatpush1.bf16.xpose.msra.mxu0 0
      %1458 = vmatprep.subr.bf16.mxu0 0
      %1459 = vmatpush1.bf16.xpose.msra.mxu0 0
      %1460 = vmatprep.subr.bf16.mxu0 0
      %1461 = vmatpush1.bf16.xpose.msra.mxu0 0
      %1462 = vmatprep.mubr.bf16.mxu0 0
      %1463 = vmatmul.mubr.bf16.gmra.mrb[0].mxu0 %v1425
      %v1464 = vpop.f32.mrb[0].mxu0
      %v1465 = vadd.f32 0.0, %v1464
      %v1466 = vpop.f32.mrb[0].mxu0
      %v1467 = vpop.f32.mrb[0].mxu0
      %v1468 = vpop.f32.mrb[0].mxu0
      %1469 = vdwg.mxu0
      %v1471 = vsel %vm1147, %v786, 0
      %v1474 = vsel %vm1147, %v1138, 0
      %1476 = vmatprep.subr.bf16.mxu0 0
      %1477 = vmatpush1.bf16.xpose.msra.mxu0 %v1474
      %1478 = vmatprep.subr.bf16.mxu0 0
      %1479 = vmatpush1.bf16.xpose.msra.mxu0 0
      %1480 = vmatprep.subr.bf16.mxu0 0
      %1481 = vmatpush1.bf16.xpose.msra.mxu0 0
      %1482 = vmatprep.subr.bf16.mxu0 0
      %1483 = vmatpush1.bf16.xpose.msra.mxu0 0
      %1484 = vmatprep.subr.bf16.mxu0 0
      %1485 = vmatpush1.bf16.xpose.msra.mxu0 0
      %1486 = vmatprep.subr.bf16.mxu0 0
      %1487 = vmatpush1.bf16.xpose.msra.mxu0 0
      %1488 = vmatprep.subr.bf16.mxu0 0
      %1489 = vmatpush1.bf16.xpose.msra.mxu0 0
      %1490 = vmatprep.subr.bf16.mxu0 0
      %1491 = vmatpush1.bf16.xpose.msra.mxu0 0
      %1492 = vmatprep.subr.bf16.mxu0 0
      %1493 = vmatpush1.bf16.xpose.msra.mxu0 0
      %1494 = vmatprep.subr.bf16.mxu0 0
      %1495 = vmatpush1.bf16.xpose.msra.mxu0 0
      %1496 = vmatprep.subr.bf16.mxu0 0
      %1497 = vmatpush1.bf16.xpose.msra.mxu0 0
      %1498 = vmatprep.subr.bf16.mxu0 0
      %1499 = vmatpush1.bf16.xpose.msra.mxu0 0
      %1500 = vmatprep.subr.bf16.mxu0 0
      %1501 = vmatpush1.bf16.xpose.msra.mxu0 0
      %1502 = vmatprep.subr.bf16.mxu0 0
      %1503 = vmatpush1.bf16.xpose.msra.mxu0 0
      %1504 = vmatprep.subr.bf16.mxu0 0
      %1505 = vmatpush1.bf16.xpose.msra.mxu0 0
      %1506 = vmatprep.subr.bf16.mxu0 0
      %1507 = vmatpush1.bf16.xpose.msra.mxu0 0
      %1508 = vmatprep.mubr.bf16.mxu0 0
      %1509 = vmatmul.mubr.bf16.gmra.mrb[0].mxu0 %v1471
      %v1510 = vpop.f32.mrb[0].mxu0
      %v1511 = vadd.f32 0.0, %v1510
      %v1512 = vpop.f32.mrb[0].mxu0
      %v1513 = vpop.f32.mrb[0].mxu0
      %v1514 = vpop.f32.mrb[0].mxu0
      %1515 = vdwg.mxu0
      %v1517 = vsel %vm1147, %v787, 0
      %v1520 = vsel %vm1147, %v1139, 0
      %1522 = vmatprep.subr.bf16.mxu0 0
      %1523 = vmatpush1.bf16.xpose.msra.mxu0 %v1520
      %1524 = vmatprep.subr.bf16.mxu0 0
      %1525 = vmatpush1.bf16.xpose.msra.mxu0 0
      %1526 = vmatprep.subr.bf16.mxu0 0
      %1527 = vmatpush1.bf16.xpose.msra.mxu0 0
      %1528 = vmatprep.subr.bf16.mxu0 0
      %1529 = vmatpush1.bf16.xpose.msra.mxu0 0
      %1530 = vmatprep.subr.bf16.mxu0 0
      %1531 = vmatpush1.bf16.xpose.msra.mxu0 0
      %1532 = vmatprep.subr.bf16.mxu0 0
      %1533 = vmatpush1.bf16.xpose.msra.mxu0 0
      %1534 = vmatprep.subr.bf16.mxu0 0
      %1535 = vmatpush1.bf16.xpose.msra.mxu0 0
      %1536 = vmatprep.subr.bf16.mxu0 0
      %1537 = vmatpush1.bf16.xpose.msra.mxu0 0
      %1538 = vmatprep.subr.bf16.mxu0 0
      %1539 = vmatpush1.bf16.xpose.msra.mxu0 0
      %1540 = vmatprep.subr.bf16.mxu0 0
      %1541 = vmatpush1.bf16.xpose.msra.mxu0 0
      %1542 = vmatprep.subr.bf16.mxu0 0
      %1543 = vmatpush1.bf16.xpose.msra.mxu0 0
      %1544 = vmatprep.subr.bf16.mxu0 0
      %1545 = vmatpush1.bf16.xpose.msra.mxu0 0
      %1546 = vmatprep.subr.bf16.mxu0 0
      %1547 = vmatpush1.bf16.xpose.msra.mxu0 0
      %1548 = vmatprep.subr.bf16.mxu0 0
      %1549 = vmatpush1.bf16.xpose.msra.mxu0 0
      %1550 = vmatprep.subr.bf16.mxu0 0
      %1551 = vmatpush1.bf16.xpose.msra.mxu0 0
      %1552 = vmatprep.subr.bf16.mxu0 0
      %1553 = vmatpush1.bf16.xpose.msra.mxu0 0
      %1554 = vmatprep.mubr.bf16.mxu0 0
      %1555 = vmatmul.mubr.bf16.gmra.mrb[0].mxu0 %v1517
      %v1556 = vpop.f32.mrb[0].mxu0
      %v1557 = vadd.f32 0.0, %v1556
      %v1558 = vpop.f32.mrb[0].mxu0
      %v1559 = vpop.f32.mrb[0].mxu0
      %v1560 = vpop.f32.mrb[0].mxu0
      %1561 = vdwg.mxu0
      %v1563 = vsel %vm1147, %v788, 0
      %v1566 = vsel %vm1147, %v1140, 0
      %1568 = vmatprep.subr.bf16.mxu0 0
      %1569 = vmatpush1.bf16.xpose.msra.mxu0 %v1566
      %1570 = vmatprep.subr.bf16.mxu0 0
      %1571 = vmatpush1.bf16.xpose.msra.mxu0 0
      %1572 = vmatprep.subr.bf16.mxu0 0
      %1573 = vmatpush1.bf16.xpose.msra.mxu0 0
      %1574 = vmatprep.subr.bf16.mxu0 0
      %1575 = vmatpush1.bf16.xpose.msra.mxu0 0
      %1576 = vmatprep.subr.bf16.mxu0 0
      %1577 = vmatpush1.bf16.xpose.msra.mxu0 0
      %1578 = vmatprep.subr.bf16.mxu0 0
      %1579 = vmatpush1.bf16.xpose.msra.mxu0 0
      %1580 = vmatprep.subr.bf16.mxu0 0
      %1581 = vmatpush1.bf16.xpose.msra.mxu0 0
      %1582 = vmatprep.subr.bf16.mxu0 0
      %1583 = vmatpush1.bf16.xpose.msra.mxu0 0
      %1584 = vmatprep.subr.bf16.mxu0 0
      %1585 = vmatpush1.bf16.xpose.msra.mxu0 0
      %1586 = vmatprep.subr.bf16.mxu0 0
      %1587 = vmatpush1.bf16.xpose.msra.mxu0 0
      %1588 = vmatprep.subr.bf16.mxu0 0
      %1589 = vmatpush1.bf16.xpose.msra.mxu0 0
      %1590 = vmatprep.subr.bf16.mxu0 0
      %1591 = vmatpush1.bf16.xpose.msra.mxu0 0
      %1592 = vmatprep.subr.bf16.mxu0 0
      %1593 = vmatpush1.bf16.xpose.msra.mxu0 0
      %1594 = vmatprep.subr.bf16.mxu0 0
      %1595 = vmatpush1.bf16.xpose.msra.mxu0 0
      %1596 = vmatprep.subr.bf16.mxu0 0
      %1597 = vmatpush1.bf16.xpose.msra.mxu0 0
      %1598 = vmatprep.subr.bf16.mxu0 0
      %1599 = vmatpush1.bf16.xpose.msra.mxu0 0
      %1600 = vmatprep.mubr.bf16.mxu0 0
      %1601 = vmatmul.mubr.bf16.gmra.mrb[0].mxu0 %v1563
      %v1602 = vpop.f32.mrb[0].mxu0
      %v1603 = vadd.f32 0.0, %v1602
      %v1604 = vpop.f32.mrb[0].mxu0
      %v1605 = vpop.f32.mrb[0].mxu0
      %v1606 = vpop.f32.mrb[0].mxu0
      %1607 = vdwg.mxu0
      %v1609 = vsel %vm1147, %v789, 0
      %v1612 = vsel %vm1147, %v1141, 0
      %1614 = vmatprep.subr.bf16.mxu0 0
      %1615 = vmatpush1.bf16.xpose.msra.mxu0 %v1612
      %1616 = vmatprep.subr.bf16.mxu0 0
      %1617 = vmatpush1.bf16.xpose.msra.mxu0 0
      %1618 = vmatprep.subr.bf16.mxu0 0
      %1619 = vmatpush1.bf16.xpose.msra.mxu0 0
      %1620 = vmatprep.subr.bf16.mxu0 0
      %1621 = vmatpush1.bf16.xpose.msra.mxu0 0
      %1622 = vmatprep.subr.bf16.mxu0 0
      %1623 = vmatpush1.bf16.xpose.msra.mxu0 0
      %1624 = vmatprep.subr.bf16.mxu0 0
      %1625 = vmatpush1.bf16.xpose.msra.mxu0 0
      %1626 = vmatprep.subr.bf16.mxu0 0
      %1627 = vmatpush1.bf16.xpose.msra.mxu0 0
      %1628 = vmatprep.subr.bf16.mxu0 0
      %1629 = vmatpush1.bf16.xpose.msra.mxu0 0
      %1630 = vmatprep.subr.bf16.mxu0 0
      %1631 = vmatpush1.bf16.xpose.msra.mxu0 0
      %1632 = vmatprep.subr.bf16.mxu0 0
      %1633 = vmatpush1.bf16.xpose.msra.mxu0 0
      %1634 = vmatprep.subr.bf16.mxu0 0
      %1635 = vmatpush1.bf16.xpose.msra.mxu0 0
      %1636 = vmatprep.subr.bf16.mxu0 0
      %1637 = vmatpush1.bf16.xpose.msra.mxu0 0
      %1638 = vmatprep.subr.bf16.mxu0 0
      %1639 = vmatpush1.bf16.xpose.msra.mxu0 0
      %1640 = vmatprep.subr.bf16.mxu0 0
      %1641 = vmatpush1.bf16.xpose.msra.mxu0 0
      %1642 = vmatprep.subr.bf16.mxu0 0
      %1643 = vmatpush1.bf16.xpose.msra.mxu0 0
      %1644 = vmatprep.subr.bf16.mxu0 0
      %1645 = vmatpush1.bf16.xpose.msra.mxu0 0
      %1646 = vmatprep.mubr.bf16.mxu0 0
      %1647 = vmatmul.mubr.bf16.gmra.mrb[0].mxu0 %v1609
      %v1648 = vpop.f32.mrb[0].mxu0
      %v1649 = vadd.f32 0.0, %v1648
      %v1650 = vpop.f32.mrb[0].mxu0
      %v1651 = vpop.f32.mrb[0].mxu0
      %v1652 = vpop.f32.mrb[0].mxu0
      %1653 = vdwg.mxu0
      %v1655 = vsel %vm1147, %v790, 0
      %v1658 = vsel %vm1147, %v1142, 0
      %1660 = vmatprep.subr.bf16.mxu0 0
      %1661 = vmatpush1.bf16.xpose.msra.mxu0 %v1658
      %1662 = vmatprep.subr.bf16.mxu0 0
      %1663 = vmatpush1.bf16.xpose.msra.mxu0 0
      %1664 = vmatprep.subr.bf16.mxu0 0
      %1665 = vmatpush1.bf16.xpose.msra.mxu0 0
      %1666 = vmatprep.subr.bf16.mxu0 0
      %1667 = vmatpush1.bf16.xpose.msra.mxu0 0
      %1668 = vmatprep.subr.bf16.mxu0 0
      %1669 = vmatpush1.bf16.xpose.msra.mxu0 0
      %1670 = vmatprep.subr.bf16.mxu0 0
      %1671 = vmatpush1.bf16.xpose.msra.mxu0 0
      %1672 = vmatprep.subr.bf16.mxu0 0
      %1673 = vmatpush1.bf16.xpose.msra.mxu0 0
      %1674 = vmatprep.subr.bf16.mxu0 0
      %1675 = vmatpush1.bf16.xpose.msra.mxu0 0
      %1676 = vmatprep.subr.bf16.mxu0 0
      %1677 = vmatpush1.bf16.xpose.msra.mxu0 0
      %1678 = vmatprep.subr.bf16.mxu0 0
      %1679 = vmatpush1.bf16.xpose.msra.mxu0 0
      %1680 = vmatprep.subr.bf16.mxu0 0
      %1681 = vmatpush1.bf16.xpose.msra.mxu0 0
      %1682 = vmatprep.subr.bf16.mxu0 0
      %1683 = vmatpush1.bf16.xpose.msra.mxu0 0
      %1684 = vmatprep.subr.bf16.mxu0 0
      %1685 = vmatpush1.bf16.xpose.msra.mxu0 0
      %1686 = vmatprep.subr.bf16.mxu0 0
      %1687 = vmatpush1.bf16.xpose.msra.mxu0 0
      %1688 = vmatprep.subr.bf16.mxu0 0
      %1689 = vmatpush1.bf16.xpose.msra.mxu0 0
      %1690 = vmatprep.subr.bf16.mxu0 0
      %1691 = vmatpush1.bf16.xpose.msra.mxu0 0
      %1692 = vmatprep.mubr.bf16.mxu0 0
      %1693 = vmatmul.mubr.bf16.gmra.mrb[0].mxu0 %v1655
      %v1694 = vpop.f32.mrb[0].mxu0
      %v1695 = vadd.f32 0.0, %v1694
      %v1696 = vpop.f32.mrb[0].mxu0
      %v1697 = vpop.f32.mrb[0].mxu0
      %v1698 = vpop.f32.mrb[0].mxu0
      %1699 = vdwg.mxu0
      %v1701 = vsel %vm1147, %v791, 0
      %v1704 = vsel %vm1147, %v1143, 0
      %1706 = vmatprep.subr.bf16.mxu0 0
      %1707 = vmatpush1.bf16.xpose.msra.mxu0 %v1704
      %1708 = vmatprep.subr.bf16.mxu0 0
      %1709 = vmatpush1.bf16.xpose.msra.mxu0 0
      %1710 = vmatprep.subr.bf16.mxu0 0
      %1711 = vmatpush1.bf16.xpose.msra.mxu0 0
      %1712 = vmatprep.subr.bf16.mxu0 0
      %1713 = vmatpush1.bf16.xpose.msra.mxu0 0
      %1714 = vmatprep.subr.bf16.mxu0 0
      %1715 = vmatpush1.bf16.xpose.msra.mxu0 0
      %1716 = vmatprep.subr.bf16.mxu0 0
      %1717 = vmatpush1.bf16.xpose.msra.mxu0 0
      %1718 = vmatprep.subr.bf16.mxu0 0
      %1719 = vmatpush1.bf16.xpose.msra.mxu0 0
      %1720 = vmatprep.subr.bf16.mxu0 0
      %1721 = vmatpush1.bf16.xpose.msra.mxu0 0
      %1722 = vmatprep.subr.bf16.mxu0 0
      %1723 = vmatpush1.bf16.xpose.msra.mxu0 0
      %1724 = vmatprep.subr.bf16.mxu0 0
      %1725 = vmatpush1.bf16.xpose.msra.mxu0 0
      %1726 = vmatprep.subr.bf16.mxu0 0
      %1727 = vmatpush1.bf16.xpose.msra.mxu0 0
      %1728 = vmatprep.subr.bf16.mxu0 0
      %1729 = vmatpush1.bf16.xpose.msra.mxu0 0
      %1730 = vmatprep.subr.bf16.mxu0 0
      %1731 = vmatpush1.bf16.xpose.msra.mxu0 0
      %1732 = vmatprep.subr.bf16.mxu0 0
      %1733 = vmatpush1.bf16.xpose.msra.mxu0 0
      %1734 = vmatprep.subr.bf16.mxu0 0
      %1735 = vmatpush1.bf16.xpose.msra.mxu0 0
      %1736 = vmatprep.subr.bf16.mxu0 0
      %1737 = vmatpush1.bf16.xpose.msra.mxu0 0
      %1738 = vmatprep.mubr.bf16.mxu0 0
      %1739 = vmatmul.mubr.bf16.gmra.mrb[0].mxu0 %v1701
      %v1740 = vpop.f32.mrb[0].mxu0
      %v1741 = vadd.f32 0.0, %v1740
      %v1742 = vpop.f32.mrb[0].mxu0
      %v1743 = vpop.f32.mrb[0].mxu0
      %v1744 = vpop.f32.mrb[0].mxu0
      %1745 = vdwg.mxu0
      %v1747 = vsel %vm1147, %v792, 0
      %v1750 = vsel %vm1147, %v1144, 0
      %1752 = vmatprep.subr.bf16.mxu0 0
      %1753 = vmatpush1.bf16.xpose.msra.mxu0 %v1750
      %1754 = vmatprep.subr.bf16.mxu0 0
      %1755 = vmatpush1.bf16.xpose.msra.mxu0 0
      %1756 = vmatprep.subr.bf16.mxu0 0
      %1757 = vmatpush1.bf16.xpose.msra.mxu0 0
      %1758 = vmatprep.subr.bf16.mxu0 0
      %1759 = vmatpush1.bf16.xpose.msra.mxu0 0
      %1760 = vmatprep.subr.bf16.mxu0 0
      %1761 = vmatpush1.bf16.xpose.msra.mxu0 0
      %1762 = vmatprep.subr.bf16.mxu0 0
      %1763 = vmatpush1.bf16.xpose.msra.mxu0 0
      %1764 = vmatprep.subr.bf16.mxu0 0
      %1765 = vmatpush1.bf16.xpose.msra.mxu0 0
      %1766 = vmatprep.subr.bf16.mxu0 0
      %1767 = vmatpush1.bf16.xpose.msra.mxu0 0
      %1768 = vmatprep.subr.bf16.mxu0 0
      %1769 = vmatpush1.bf16.xpose.msra.mxu0 0
      %1770 = vmatprep.subr.bf16.mxu0 0
      %1771 = vmatpush1.bf16.xpose.msra.mxu0 0
      %1772 = vmatprep.subr.bf16.mxu0 0
      %1773 = vmatpush1.bf16.xpose.msra.mxu0 0
      %1774 = vmatprep.subr.bf16.mxu0 0
      %1775 = vmatpush1.bf16.xpose.msra.mxu0 0
      %1776 = vmatprep.subr.bf16.mxu0 0
      %1777 = vmatpush1.bf16.xpose.msra.mxu0 0
      %1778 = vmatprep.subr.bf16.mxu0 0
      %1779 = vmatpush1.bf16.xpose.msra.mxu0 0
      %1780 = vmatprep.subr.bf16.mxu0 0
      %1781 = vmatpush1.bf16.xpose.msra.mxu0 0
      %1782 = vmatprep.subr.bf16.mxu0 0
      %1783 = vmatpush1.bf16.xpose.msra.mxu0 0
      %1784 = vmatprep.mubr.bf16.mxu0 0
      %1785 = vmatmul.mubr.bf16.gmra.mrb[0].mxu0 %v1747
      %v1786 = vpop.f32.mrb[0].mxu0
      %v1787 = vadd.f32 0.0, %v1786
      %v1788 = vpop.f32.mrb[0].mxu0
      %v1789 = vpop.f32.mrb[0].mxu0
      %v1790 = vpop.f32.mrb[0].mxu0
      %1791 = vdwg.mxu0
      %v1793 = vsel %vm1147, %v793, 0
      %v1796 = vsel %vm1147, %v1145, 0
      %1798 = vmatprep.subr.bf16.mxu0 0
      %1799 = vmatpush1.bf16.xpose.msra.mxu0 %v1796
      %1800 = vmatprep.subr.bf16.mxu0 0
      %1801 = vmatpush1.bf16.xpose.msra.mxu0 0
      %1802 = vmatprep.subr.bf16.mxu0 0
      %1803 = vmatpush1.bf16.xpose.msra.mxu0 0
      %1804 = vmatprep.subr.bf16.mxu0 0
      %1805 = vmatpush1.bf16.xpose.msra.mxu0 0
      %1806 = vmatprep.subr.bf16.mxu0 0
      %1807 = vmatpush1.bf16.xpose.msra.mxu0 0
      %1808 = vmatprep.subr.bf16.mxu0 0
      %1809 = vmatpush1.bf16.xpose.msra.mxu0 0
      %1810 = vmatprep.subr.bf16.mxu0 0
      %1811 = vmatpush1.bf16.xpose.msra.mxu0 0
      %1812 = vmatprep.subr.bf16.mxu0 0
      %1813 = vmatpush1.bf16.xpose.msra.mxu0 0
      %1814 = vmatprep.subr.bf16.mxu0 0
      %1815 = vmatpush1.bf16.xpose.msra.mxu0 0
      %1816 = vmatprep.subr.bf16.mxu0 0
      %1817 = vmatpush1.bf16.xpose.msra.mxu0 0
      %1818 = vmatprep.subr.bf16.mxu0 0
      %1819 = vmatpush1.bf16.xpose.msra.mxu0 0
      %1820 = vmatprep.subr.bf16.mxu0 0
      %1821 = vmatpush1.bf16.xpose.msra.mxu0 0
      %1822 = vmatprep.subr.bf16.mxu0 0
      %1823 = vmatpush1.bf16.xpose.msra.mxu0 0
      %1824 = vmatprep.subr.bf16.mxu0 0
      %1825 = vmatpush1.bf16.xpose.msra.mxu0 0
      %1826 = vmatprep.subr.bf16.mxu0 0
      %1827 = vmatpush1.bf16.xpose.msra.mxu0 0
      %1828 = vmatprep.subr.bf16.mxu0 0
      %1829 = vmatpush1.bf16.xpose.msra.mxu0 0
      %1830 = vmatprep.mubr.bf16.mxu0 0
      %1831 = vmatmul.mubr.bf16.gmra.mrb[0].mxu0 %v1793
      %v1832 = vpop.f32.mrb[0].mxu0
      %v1833 = vadd.f32 0.0, %v1832
      %v1834 = vpop.f32.mrb[0].mxu0
      %v1835 = vpop.f32.mrb[0].mxu0
      %v1836 = vpop.f32.mrb[0].mxu0
      %1837 = vdwg.mxu0
      %v1839 = vsel %vm1147, %v794, 0
      %v1842 = vsel %vm1147, %v1146, 0
      %1844 = vmatprep.subr.bf16.mxu0 0
      %1845 = vmatpush1.bf16.xpose.msra.mxu0 %v1842
      %1846 = vmatprep.subr.bf16.mxu0 0
      %1847 = vmatpush1.bf16.xpose.msra.mxu0 0
      %1848 = vmatprep.subr.bf16.mxu0 0
      %1849 = vmatpush1.bf16.xpose.msra.mxu0 0
      %1850 = vmatprep.subr.bf16.mxu0 0
      %1851 = vmatpush1.bf16.xpose.msra.mxu0 0
      %1852 = vmatprep.subr.bf16.mxu0 0
      %1853 = vmatpush1.bf16.xpose.msra.mxu0 0
      %1854 = vmatprep.subr.bf16.mxu0 0
      %1855 = vmatpush1.bf16.xpose.msra.mxu0 0
      %1856 = vmatprep.subr.bf16.mxu0 0
      %1857 = vmatpush1.bf16.xpose.msra.mxu0 0
      %1858 = vmatprep.subr.bf16.mxu0 0
      %1859 = vmatpush1.bf16.xpose.msra.mxu0 0
      %1860 = vmatprep.subr.bf16.mxu0 0
      %1861 = vmatpush1.bf16.xpose.msra.mxu0 0
      %1862 = vmatprep.subr.bf16.mxu0 0
      %1863 = vmatpush1.bf16.xpose.msra.mxu0 0
      %1864 = vmatprep.subr.bf16.mxu0 0
      %1865 = vmatpush1.bf16.xpose.msra.mxu0 0
      %1866 = vmatprep.subr.bf16.mxu0 0
      %1867 = vmatpush1.bf16.xpose.msra.mxu0 0
      %1868 = vmatprep.subr.bf16.mxu0 0
      %1869 = vmatpush1.bf16.xpose.msra.mxu0 0
      %1870 = vmatprep.subr.bf16.mxu0 0
      %1871 = vmatpush1.bf16.xpose.msra.mxu0 0
      %1872 = vmatprep.subr.bf16.mxu0 0
      %1873 = vmatpush1.bf16.xpose.msra.mxu0 0
      %1874 = vmatprep.subr.bf16.mxu0 0
      %1875 = vmatpush1.bf16.xpose.msra.mxu0 0
      %1876 = vmatprep.mubr.bf16.mxu0 0
      %1877 = vmatmul.mubr.bf16.gmra.mrb[0].mxu0 %v1839
      %v1878 = vpop.f32.mrb[0].mxu0
      %v1879 = vadd.f32 0.0, %v1878
      %v1880 = vpop.f32.mrb[0].mxu0
      %v1881 = vpop.f32.mrb[0].mxu0
      %v1882 = vpop.f32.mrb[0].mxu0
      %1883 = vdwg.mxu0
      %vm1884 = vcmask 125952
      %1885 = vst.msk [vmem:[%s368] sm:$0xf] %vm1884, %v1189
      %1886 = vst.msk [vmem:[%s368 + $0x4] sm:$0xf] %vm1884, %v1235
      %1887 = vst.msk [vmem:[%s368 + $0x8] sm:$0xf] %vm1884, %v1281
      %1888 = vst.msk [vmem:[%s368 + $0xc] sm:$0xf] %vm1884, %v1327
      %1889 = vst.msk [vmem:[%s368 + $0x10] sm:$0xf] %vm1884, %v1373
      %1890 = vst.msk [vmem:[%s368 + $0x14] sm:$0xf] %vm1884, %v1419
      %1891 = vst.msk [vmem:[%s368 + $0x18] sm:$0xf] %vm1884, %v1465
      %1892 = vst.msk [vmem:[%s368 + $0x1c] sm:$0xf] %vm1884, %v1511
      %1893 = vst.msk [vmem:[%s368 + $0x20] sm:$0xf] %vm1884, %v1557
      %1894 = vst.msk [vmem:[%s368 + $0x24] sm:$0xf] %vm1884, %v1603
      %1895 = vst.msk [vmem:[%s368 + $0x28] sm:$0xf] %vm1884, %v1649
      %1896 = vst.msk [vmem:[%s368 + $0x2c] sm:$0xf] %vm1884, %v1695
      %1897 = vst.msk [vmem:[%s368 + $0x30] sm:$0xf] %vm1884, %v1741
      %1898 = vst.msk [vmem:[%s368 + $0x34] sm:$0xf] %vm1884, %v1787
      %1899 = vst.msk [vmem:[%s368 + $0x38] sm:$0xf] %vm1884, %v1833
      %1900 = vst.msk [vmem:[%s368 + $0x3c] sm:$0xf] %vm1884, %v1879
      %s1901 = smul.u32 16, %s22
      %p1902 = scmp.lt.s32.totalorder %s21, 1
      %s1903 = scalar_select %p1902, %s21, 1
      %p1904 = scmp.lt.s32.totalorder %s1901, 15
      %s1905 = scalar_select %p1904, %s1901, 15
      %s1906 = smul.addr %s1903, 16
      %s1907 = sadd.s32 %s1905, %s1906
      %s1908 = smul.addr %s1907, 4
      %s1909 = scalar_lea.vmem %s4, %s1908
      %s1910 = smul.u32 2, %s22
      %p1911 = scmp.lt.s32.totalorder %s21, 1
      %s1912 = scalar_select %p1911, %s21, 1
      %p1913 = scmp.lt.s32.totalorder %s1910, 1
      %s1914 = scalar_select %p1913, %s1910, 1
      %s1915 = smul.addr %s1912, 2
      %s1916 = sadd.s32 %s1914, %s1915
      %s1917 = smul.addr %s1916, 2
      %s1918 = scalar_lea.vmem %s5, %s1917
      // Predicated region
      $region37: #{disparity_warping.1} parent=35 // pred_check
        %p1919 = pneg %p161
      $region38: #{disparity_warping.1} parent=35 // pred_check_branch
        %1921 = sbr.rel (%p1919) target = $region40
      $region39: #{disparity_warping.1} parent=35 // pred_region
        %s1922 = smul.u32 16, %s22
      $region40: #{disparity_warping.1} parent=35 // pred_fallthru
        _
      // Predicated region
      $region41: #{disparity_warping.1} parent=35 // pred_check
        %p1923 = pneg %p189
      $region42: #{disparity_warping.1} parent=35 // pred_check_branch
        %1925 = sbr.rel (%p1923) target = $region44
      $region43: #{disparity_warping.1} parent=35 // pred_region
        %s1926 = smul.u32 2, %s22
      $region44: #{disparity_warping.1} parent=35 // pred_fallthru
        _
    $region36: #{disparity_warping.1} parent=5 // pred_fallthru
      _
    %p1927 = scmp.le.s32.totalorder 2, %s12
    // Predicated region
    $region45: #{disparity_warping.1} parent=5 // pred_check
      %p1928 = pneg %p1927
    $region46: #{disparity_warping.1} parent=5 // pred_check_branch
      %1930 = sbr.rel (%p1928) target = $region48
    $region47: #{disparity_warping.1} parent=5 // pred_region
      %s1931 = ssub.s32 %s12, 2
      // Predicated region
      $region49: #{disparity_warping.1} parent=47 // pred_check
        %p1932 = pneg %p167
      $region50: #{disparity_warping.1} parent=47 // pred_check_branch
        %1934 = sbr.rel (%p1932) target = $region52
      $region51: #{disparity_warping.1} parent=47 // pred_region
        %s1935 = smul.u32 16, %s24
        %p1936 = scmp.lt.s32.totalorder %s23, 1
        %s1937 = scalar_select %p1936, %s23, 1
        %p1938 = scmp.lt.s32.totalorder %s1935, 15
        %s1939 = scalar_select %p1938, %s1935, 15
        %s1940 = smul.addr %s1937, 16
        %s1941 = sadd.s32 %s1939, %s1940
        %s1942 = smul.addr %s1941, 4
        %s1943 = scalar_lea.vmem %s4, %s1942
      $region52: #{disparity_warping.1} parent=47 // pred_fallthru
        _
      // Predicated region
      $region53: #{disparity_warping.1} parent=47 // pred_check
        %p1944 = pneg %p195
      $region54: #{disparity_warping.1} parent=47 // pred_check_branch
        %1946 = sbr.rel (%p1944) target = $region56
      $region55: #{disparity_warping.1} parent=47 // pred_region
        %s1947 = smul.u32 2, %s24
        %p1948 = scmp.lt.s32.totalorder %s23, 1
        %s1949 = scalar_select %p1948, %s23, 1
        %p1950 = scmp.lt.s32.totalorder %s1947, 1
        %s1951 = scalar_select %p1950, %s1947, 1
        %s1952 = smul.addr %s1949, 2
        %s1953 = sadd.s32 %s1951, %s1952
        %s1954 = smul.addr %s1953, 2
        %s1955 = scalar_lea.vmem %s5, %s1954
      $region56: #{disparity_warping.1} parent=47 // pred_fallthru
        _
    $region48: #{disparity_warping.1} parent=5 // pred_fallthru
      _
  $region6: #{disparity_warping.1} parent=0 // loop_footer
    %s16 = sadd.s32 1, %s12
  $region7: #{disparity_warping.1} parent=0 // loop_footer_branch
    %11 = sbr.rel target = $region3
  $region8: #{disparity_warping.1} parent=0 // loop_exit
    _

</llo_original>
